<compile_context>
chip_gen: v5e
topology: v5e:2x2
jax: 0.10.0
libtpu: 0.0.40
codegen_flags: <defaults>
</compile_context>

<pallas_src>
import math

import numpy as np

import jax
import jax.numpy as jnp
from jax.experimental import pallas as pl
from jax.experimental.pallas import tpu as pltpu

LOG2 = math.log(2.0)
BN_EPS = 1e-5
LANE = 128


def _round_up(v, m):
    return ((v + m - 1) // m) * m


def _nbytes(shape, dtype):
    n = 1
    for s in shape:
        n *= int(s)
    return n * jnp.dtype(dtype).itemsize


def _relu(x):
    return jnp.maximum(x, 0.0)


def _softplus(x):
    # numerically stable softplus (VPU max/abs + EUP exp/log1p)
    return jnp.maximum(x, 0.0) + jnp.log1p(jnp.exp(-jnp.abs(x)))


def _pick_tiling(num_nodes):
    """Prefer 256-wide node tiles (fills the 256x256 MXU on v6e/v7x, amortizes
    the ~0.35us grid-step overhead; v5e can push to 512) but keep >= 2 row
    tiles so v7x megacore has work on the "parallel" axis; else fall back to
    128."""
    for tn in (256, 128):
        n_pad = _round_up(max(num_nodes, tn), tn)
        if tn == 128 or n_pad // tn >= 2:
            return tn, n_pad
    return 128, _round_up(max(num_nodes, 128), 128)


# ---------------------------------------------------------------------------
# Optional single-buffering of constant (never-changing) weight blocks.
# Halves resident weight VMEM (v7x: 32 MiB scoped default / 64 MiB physical).
# Probed once so older jax without Buffered(1) support falls back cleanly.
# ---------------------------------------------------------------------------
_BUFFERED_WEIGHTS = None


def _weights_buffered():
    global _BUFFERED_WEIGHTS
    if _BUFFERED_WEIGHTS is None:
        try:
            def _probe_kernel(x_ref, o_ref):
                o_ref[...] = x_ref[...] + 1.0

            fn = pl.pallas_call(
                _probe_kernel,
                out_shape=jax.ShapeDtypeStruct((16, LANE), jnp.float32),
                grid=(2,),
                in_specs=[pl.BlockSpec((8, LANE), lambda i: (0, 0),
                                       pipeline_mode=pl.Buffered(buffer_count=1))],
                out_specs=pl.BlockSpec((8, LANE), lambda i: (i, 0)),
            )
            jax.block_until_ready(fn(jnp.zeros((8, LANE), jnp.float32)))
            _BUFFERED_WEIGHTS = True
        except Exception:
            _BUFFERED_WEIGHTS = False
    return _BUFFERED_WEIGHTS


def _wspec(shape, index_map):
    """BlockSpec for a grid-constant (weight / stat) operand."""
    if _weights_buffered():
        return pl.BlockSpec(shape, index_map,
                            pipeline_mode=pl.Buffered(buffer_count=1))
    return pl.BlockSpec(shape, index_map)


def _compiler_params(sem, vmem_est=None):
    kwargs = {"dimension_semantics": sem}
    if vmem_est is not None and vmem_est > 32 * 2**20:
        # Only raise past the 32 MiB scoped default when actually needed
        # (v7x physical VMEM is 64 MiB; v5e/v6e have 128 MiB).
        kwargs["vmem_limit_bytes"] = int(min(vmem_est * 5 // 4, 96 * 2**20))
    return pltpu.CompilerParams(**kwargs)


# ---------------------------------------------------------------------------
# Block-sparse adjacency metadata (host-side, O(E)): per row tile, the list of
# column blocks that contain at least one edge, padded to a common length.
# ---------------------------------------------------------------------------
def _block_sparsity(edge_index, tn, n_pad):
    n_blk = n_pad // tn
    ei = np.asarray(edge_index)
    nz = np.zeros((n_blk, n_blk), dtype=bool)
    if ei.size:
        nz[ei[1] // tn, ei[0] // tn] = True
    cnt = nz.sum(axis=1).astype(np.int32)
    maxk = max(int(cnt.max()) if cnt.size else 0, 1)
    ids = np.zeros((n_blk, maxk), dtype=np.int32)
    for i in range(n_blk):
        nzk = np.nonzero(nz[i])[0].astype(np.int32)
        ids[i, :len(nzk)] = nzk
        if len(nzk) and len(nzk) < maxk:
            ids[i, len(nzk):] = nzk[-1]      # repeat a valid block; compute is gated
    return jnp.asarray(ids), jnp.asarray(cnt), maxk


# ---------------------------------------------------------------------------
# Kernel 1: one GIN conv (pre-BatchNorm of its own output), with
#   * block-sparse A@x_raw accumulation (scalar-prefetched block ids),
#   * previous layer's BN applied in the epilogue via the affine-commute
#     identity (inner K loop is pure MXU+DMA),
#   * fused per-row-tile BatchNorm sum/sumsq statistics.
# ---------------------------------------------------------------------------
def _make_gin_conv_kernel(tn, n_valid):
    def kernel(ids_ref, cnt_ref, a_ref, xk_ref, xs_ref, deg_ref,
               mean_ref, istd_ref, w1_ref, b1_ref, w2_ref, b2_ref,
               h_ref, psum_ref, psq_ref, acc_ref):
        del ids_ref  # consumed by the index_maps only
        i = pl.program_id(0)
        k = pl.program_id(1)

        @pl.when(k == 0)
        def _():
            acc_ref[...] = jnp.zeros_like(acc_ref)

        # Only accumulate real (nonzero) adjacency blocks; padded grid slots
        # re-fetch a valid block but skip the MXU work.
        @pl.when(k < cnt_ref[i])
        def _():
            acc_ref[...] += jnp.dot(a_ref[...], xk_ref[...],
                                    preferred_element_type=jnp.float32)

        @pl.when(k == pl.num_programs(1) - 1)
        def _():
            mean = mean_ref[...]                         # (1, F_in) f32
            istd = istd_ref[...]                         # (1, F_in) f32
            deg = deg_ref[...]                           # (tn, 1)  f32
            xs = xs_ref[...].astype(jnp.float32)
            # BN commuted past the (eps=0) GIN aggregation:
            #   x_n + A@x_n = (x + A@x_raw - (1 + deg) * mean) * inv_std
            agg = ((acc_ref[...] + xs - (1.0 + deg) * mean) * istd).astype(jnp.bfloat16)
            h = _relu(jnp.dot(agg, w1_ref[...],
                              preferred_element_type=jnp.float32) + b1_ref[...])
            h = jnp.dot(h.astype(jnp.bfloat16), w2_ref[...],
                        preferred_element_type=jnp.float32) + b2_ref[...]
            h = _relu(h)
            h_ref[...] = h.astype(h_ref.dtype)
            # fused BatchNorm statistics for this row tile (mask padded rows)
            rows = jax.lax.broadcasted_iota(jnp.int32, (tn, 1), 0) + i * tn
            hm = h * (rows < n_valid).astype(jnp.float32)
            psum_ref[...] = jnp.sum(hm, axis=0, keepdims=True)[None]
            psq_ref[...] = jnp.sum(hm * hm, axis=0, keepdims=True)[None]

    return kernel


def gin_conv(graph, x, mean, istd, w1, b1, w2, b2, num_nodes):
    tn, n_pad, maxk = graph["tn"], graph["n_pad"], graph["maxk"]
    n_blk = n_pad // tn
    f_in = x.shape[1]
    h_dim = w1.shape[1]

    in_specs = [
        pl.BlockSpec((tn, tn), lambda i, k, ids, cnt: (i, ids[i, k])),    # A block (sparse)
        pl.BlockSpec((tn, f_in), lambda i, k, ids, cnt: (ids[i, k], 0)),  # x, gathered K block
        pl.BlockSpec((tn, f_in), lambda i, k, ids, cnt: (i, 0)),          # x, self block
        pl.BlockSpec((tn, 1), lambda i, k, ids, cnt: (i, 0)),             # deg = A @ 1
        _wspec((1, f_in), lambda i, k, ids, cnt: (0, 0)),                 # BN mean (prev layer)
        _wspec((1, f_in), lambda i, k, ids, cnt: (0, 0)),                 # BN inv_std
        _wspec((f_in, h_dim), lambda i, k, ids, cnt: (0, 0)),             # w1 (VMEM resident)
        _wspec((1, h_dim), lambda i, k, ids, cnt: (0, 0)),                # b1
        _wspec((h_dim, h_dim), lambda i, k, ids, cnt: (0, 0)),            # w2
        _wspec((1, h_dim), lambda i, k, ids, cnt: (0, 0)),                # b2
    ]
    out_specs = (
        pl.BlockSpec((tn, h_dim), lambda i, k, ids, cnt: (i, 0)),
        pl.BlockSpec((1, 1, h_dim), lambda i, k, ids, cnt: (i, 0, 0)),
        pl.BlockSpec((1, 1, h_dim), lambda i, k, ids, cnt: (i, 0, 0)),
    )
    out_shape = (
        jax.ShapeDtypeStruct((n_pad, h_dim), jnp.bfloat16),      # h (pre-BN)
        jax.ShapeDtypeStruct((n_blk, 1, h_dim), jnp.float32),    # per-tile sum
        jax.ShapeDtypeStruct((n_blk, 1, h_dim), jnp.float32),    # per-tile sumsq
    )
    wbytes = sum(_nbytes(a.shape, a.dtype) for a in (w1, b1, w2, b2))
    est = ((1 if _weights_buffered() else 2) * wbytes
           + 2 * (_nbytes((tn, tn), jnp.bfloat16) + _nbytes((tn, f_in), jnp.bfloat16))
           + 2 * _nbytes((tn, f_in), jnp.bfloat16)
           + 2 * _nbytes((tn, h_dim), jnp.bfloat16)
           + _nbytes((tn, f_in), jnp.float32)
           + 4 * _nbytes((tn, max(f_in, h_dim)), jnp.float32))

    return pl.pallas_call(
        _make_gin_conv_kernel(tn, num_nodes),
        out_shape=out_shape,
        grid_spec=pltpu.PrefetchScalarGridSpec(
            num_scalar_prefetch=2,
            grid=(n_blk, maxk),
            in_specs=in_specs,
            out_specs=out_specs,
            scratch_shapes=[pltpu.VMEM((tn, f_in), jnp.float32)]),
        compiler_params=_compiler_params(("parallel", "arbitrary"), est),
    )(graph["blk_ids"], graph["blk_cnt"], graph["adj"], x, x, graph["deg"],
      mean, istd, w1, b1, w2, b2)


def _bn_mean_istd(psum, psq, n_valid):
    """Tiny (1,H) wrapper-side reduction of per-tile partial stats."""
    inv_n = 1.0 / float(n_valid)
    mean = jnp.sum(psum, axis=0) * inv_n
    var = jnp.maximum(jnp.sum(psq, axis=0) * inv_n - mean * mean, 0.0)
    return mean, jax.lax.rsqrt(var + BN_EPS)


# ---------------------------------------------------------------------------
# Kernel 2 (fused): BN + concat layers into an M tile (VMEM scratch only) +
# global_add_pool partial sums + local_d FF head -> l_enc.  M never hits HBM.
# ---------------------------------------------------------------------------
def _make_local_kernel(num_layers, h_dim, e_dim):
    def kernel(*refs):
        p_ref = refs[0]
        h_refs = refs[1:1 + num_layers]
        mean_refs = refs[1 + num_layers:1 + 2 * num_layers]
        istd_refs = refs[1 + 2 * num_layers:1 + 3 * num_layers]
        (wc_ref, bc_ref, w2_ref, b2_ref, w3_ref, b3_ref,
         l_ref, y_ref, m_buf) = refs[1 + 3 * num_layers:]

        # BatchNorm + concat into the (tn, e_dim) M tile (VMEM scratch).
        for l in range(num_layers):
            hn = ((h_refs[l][...].astype(jnp.float32) - mean_refs[l][...])
                  * istd_refs[l][...])
            m_buf[:, l * h_dim:(l + 1) * h_dim] = hn.astype(jnp.bfloat16)
        m = m_buf[...]

        # global_add_pool partial for this node tile: y_i = P_tile @ M_tile.
        # (pool_mat columns for padded nodes are zero, so garbage rows of M
        #  never reach y.)
        y_ref[...] = jnp.dot(p_ref[...], m,
                             preferred_element_type=jnp.float32)[None]

        # local_d FF head; first linear fused with the shortcut ([W1 | Ws]).
        t = jnp.dot(m, wc_ref[...], preferred_element_type=jnp.float32) + bc_ref[...]
        h = _relu(t[:, :e_dim])
        shortcut = t[:, e_dim:]
        h = _relu(jnp.dot(h.astype(jnp.bfloat16), w2_ref[...],
                          preferred_element_type=jnp.float32) + b2_ref[...])
        h = _relu(jnp.dot(h.astype(jnp.bfloat16), w3_ref[...],
                          preferred_element_type=jnp.float32) + b3_ref[...])
        l_ref[...] = (h + shortcut).astype(l_ref.dtype)

    return kernel


def build_local_and_pool(graph, pool_mat, h_list, mean_list, istd_list, ff, g_pad):
    num_layers = len(h_list)
    tn, n_pad = graph["tn"], graph["n_pad"]
    h_dim = h_list[0].shape[1]
    e_dim = num_layers * h_dim
    n_blk = n_pad // tn
    wc, bc, w2, b2, w3, b3 = ff

    in_specs = ([pl.BlockSpec((g_pad, tn), lambda i: (0, i))]
                + [pl.BlockSpec((tn, h_dim), lambda i: (i, 0))] * num_layers
                + [_wspec((1, h_dim), lambda i: (0, 0))] * (2 * num_layers)
                + [_wspec(wc.shape, lambda i: (0, 0)),
                   _wspec(bc.shape, lambda i: (0, 0)),
                   _wspec(w2.shape, lambda i: (0, 0)),
                   _wspec(b2.shape, lambda i: (0, 0)),
                   _wspec(w3.shape, lambda i: (0, 0)),
                   _wspec(b3.shape, lambda i: (0, 0))])
    wbytes = sum(_nbytes(a.shape, a.dtype) for a in ff)
    est = ((1 if _weights_buffered() else 2) * wbytes
           + 2 * (_nbytes((g_pad, tn), jnp.bfloat16)
                  + num_layers * _nbytes((tn, h_dim), jnp.bfloat16)
                  + _nbytes((tn, e_dim), jnp.bfloat16)
                  + _nbytes((g_pad, e_dim), jnp.float32))
           + _nbytes((tn, e_dim), jnp.bfloat16)
           + 6 * _nbytes((tn, e_dim), jnp.float32))

    l_enc, y_part = pl.pallas_call(
        _make_local_kernel(num_layers, h_dim, e_dim),
        out_shape=(jax.ShapeDtypeStruct((n_pad, e_dim), jnp.bfloat16),
                   jax.ShapeDtypeStruct((n_blk, g_pad, e_dim), jnp.float32)),
        grid=(n_blk,),
        in_specs=in_specs,
        out_specs=(pl.BlockSpec((tn, e_dim), lambda i: (i, 0)),
                   pl.BlockSpec((1, g_pad, e_dim), lambda i: (i, 0, 0))),
        scratch_shapes=[pltpu.VMEM((tn, e_dim), jnp.bfloat16)],
        compiler_params=_compiler_params(("parallel",), est),
    )(pool_mat, *h_list, *mean_list, *istd_list, wc, bc, w2, b2, w3, b3)
    # Tiny cross-tile reduction of the pool partials (g_pad x e_dim per tile).
    return l_enc, jnp.sum(y_part, axis=0)


# ---------------------------------------------------------------------------
# Kernel 3: FF head for the pooled graph embeddings (global_d), single tile.
# ---------------------------------------------------------------------------
def _ff_kernel(x_ref, wc_ref, bc_ref, w2_ref, b2_ref, w3_ref, b3_ref, o_ref):
    e = o_ref.shape[1]
    x = x_ref[...]
    t = jnp.dot(x, wc_ref[...], preferred_element_type=jnp.float32) + bc_ref[...]
    h = _relu(t[:, :e])
    shortcut = t[:, e:]
    h = _relu(jnp.dot(h.astype(jnp.bfloat16), w2_ref[...],
                      preferred_element_type=jnp.float32) + b2_ref[...])
    h = _relu(jnp.dot(h.astype(jnp.bfloat16), w3_ref[...],
                      preferred_element_type=jnp.float32) + b3_ref[...])
    o_ref[...] = (h + shortcut).astype(o_ref.dtype)


def ff_apply(x, ff_params):
    wc, bc, w2, b2, w3, b3 = ff_params
    r, e = x.shape
    wbytes = sum(_nbytes(a.shape, a.dtype) for a in ff_params)
    est = ((1 if _weights_buffered() else 2) * wbytes
           + 4 * _nbytes((r, 2 * e), jnp.float32))
    return pl.pallas_call(
        _ff_kernel,
        out_shape=jax.ShapeDtypeStruct((r, e), jnp.bfloat16),
        grid=(1,),
        in_specs=[pl.BlockSpec((r, e), lambda i: (0, 0)),
                  _wspec(wc.shape, lambda i: (0, 0)),
                  _wspec(bc.shape, lambda i: (0, 0)),
                  _wspec(w2.shape, lambda i: (0, 0)),
                  _wspec(b2.shape, lambda i: (0, 0)),
                  _wspec(w3.shape, lambda i: (0, 0)),
                  _wspec(b3.shape, lambda i: (0, 0))],
        out_specs=pl.BlockSpec((r, e), lambda i: (0, 0)),
        compiler_params=_compiler_params(("arbitrary",), est),
    )(x, wc, bc, w2, b2, w3, b3)


# ---------------------------------------------------------------------------
# Kernel 4: local/global JSD loss, tiled over node rows, scalar accumulated
# into a full (8,128) f32 tile (lane-dense store; [0,0] read on the host).
# Masking the *output* of softplus by pos/neg is equivalent to the reference's
# masking of the input (softplus(0) == log 2 makes masked terms exactly 0).
# ---------------------------------------------------------------------------
def _make_jsd_kernel(num_nodes, num_graphs):
    c_pos = 1.0 / float(num_nodes)
    c_neg = 1.0 / float(num_nodes * max(num_graphs - 1, 1))

    def kernel(l_ref, g_ref, pos_ref, neg_ref, o_ref):
        i = pl.program_id(0)

        @pl.when(i == 0)
        def _():
            o_ref[...] = jnp.zeros_like(o_ref)

        res = jax.lax.dot_general(
            l_ref[...], g_ref[...],
            dimension_numbers=(((1,), (1,)), ((), ())),
            preferred_element_type=jnp.float32)              # (TN, G_pad)
        sp = _softplus(-res)
        e_pos = jnp.sum((LOG2 - sp) * pos_ref[...])
        e_neg = jnp.sum((sp + res - LOG2) * neg_ref[...])
        o_ref[...] = o_ref[...] + (e_neg * c_neg - e_pos * c_pos)

    return kernel


def local_global_loss(l_enc, g_enc, pos_mask, neg_mask, num_nodes, num_graphs, tn):
    n_pad, e = l_enc.shape
    g_pad = g_enc.shape[0]
    out = pl.pallas_call(
        _make_jsd_kernel(num_nodes, num_graphs),
        out_shape=jax.ShapeDtypeStruct((8, LANE), jnp.float32),
        grid=(n_pad // tn,),
        in_specs=[pl.BlockSpec((tn, e), lambda i: (i, 0)),
                  _wspec((g_pad, e), lambda i: (0, 0)),
                  pl.BlockSpec((tn, g_pad), lambda i: (i, 0)),
                  pl.BlockSpec((tn, g_pad), lambda i: (i, 0))],
        out_specs=pl.BlockSpec((8, LANE), lambda i: (0, 0)),
        compiler_params=_compiler_params(("arbitrary",)),
    )(l_enc, g_enc, pos_mask, neg_mask)
    return out[0, 0]


# ---------------------------------------------------------------------------
# Parameter init (xavier_uniform_ weights, zero biases) + padding to 128-lane
# layouts (real hidden columns live at offsets l*H_pad .. l*H_pad+H).
# ---------------------------------------------------------------------------
def xavier_uniform(key, fan_in, fan_out):
    bound = math.sqrt(6.0 / (fan_in + fan_out))
    return jax.random.uniform(key, (fan_in, fan_out), jnp.float32, -bound, bound)


def init_linear(key, fan_in, fan_out):
    return xavier_uniform(key, fan_in, fan_out), jnp.zeros((1, fan_out), jnp.float32)


def init_params(key, num_features, hidden_dim, num_gc_layers):
    emb = hidden_dim * num_gc_layers
    keys = jax.random.split(key, 2 * num_gc_layers + 8)
    kidx = 0
    gin_layers = []
    for i in range(num_gc_layers):
        in_dim = num_features if i == 0 else hidden_dim
        w1, b1 = init_linear(keys[kidx], in_dim, hidden_dim); kidx += 1
        w2, b2 = init_linear(keys[kidx], hidden_dim, hidden_dim); kidx += 1
        gin_layers.append((w1, b1, w2, b2))

    def init_ff():
        nonlocal kidx
        p = []
        for _ in range(4):  # 3 block linears + 1 shortcut linear
            w, b = init_linear(keys[kidx], emb, emb); kidx += 1
            p.extend([w, b])
        return tuple(p)

    return {"gin": gin_layers, "local_d": init_ff(), "global_d": init_ff()}


def _pad_matrix(w, rows, cols):
    out = jnp.zeros((rows, cols), jnp.float32)
    return out.at[: w.shape[0], : w.shape[1]].set(w)


def _pad_ff_weight(w, h, h_pad, num_layers):
    out = jnp.zeros((num_layers * h_pad, num_layers * h_pad), jnp.float32)
    for lr in range(num_layers):
        for lc in range(num_layers):
            out = out.at[lr * h_pad: lr * h_pad + h,
                         lc * h_pad: lc * h_pad + h].set(
                w[lr * h:(lr + 1) * h, lc * h:(lc + 1) * h])
    return out


def _pad_ff_bias(b, h, h_pad, num_layers):
    out = jnp.zeros((1, num_layers * h_pad), jnp.float32)
    for lc in range(num_layers):
        out = out.at[:, lc * h_pad: lc * h_pad + h].set(b[:, lc * h:(lc + 1) * h])
    return out


def pad_params(params, num_features, hidden_dim, num_gc_layers):
    f_pad = _round_up(num_features, LANE)
    h_pad = _round_up(hidden_dim, LANE)

    gin = []
    for i, (w1, b1, w2, b2) in enumerate(params["gin"]):
        in_pad = f_pad if i == 0 else h_pad
        gin.append((
            _pad_matrix(w1, in_pad, h_pad).astype(jnp.bfloat16),
            _pad_matrix(b1, 1, h_pad),
            _pad_matrix(w2, h_pad, h_pad).astype(jnp.bfloat16),
            _pad_matrix(b2, 1, h_pad),
        ))

    def pad_ff(p):
        w1, b1, w2, b2, w3, b3, ws, bs = p
        pw = lambda w: _pad_ff_weight(w, hidden_dim, h_pad, num_gc_layers)
        pb = lambda b: _pad_ff_bias(b, hidden_dim, h_pad, num_gc_layers)
        wc = jnp.concatenate([pw(w1), pw(ws)], axis=1).astype(jnp.bfloat16)
        bc = jnp.concatenate([pb(b1), pb(bs)], axis=1)
        return (wc, bc, pw(w2).astype(jnp.bfloat16), pb(b2),
                pw(w3).astype(jnp.bfloat16), pb(b3))

    return {"gin": gin,
            "local_d": pad_ff(params["local_d"]),
            "global_d": pad_ff(params["global_d"]),
            "dims": (num_features, hidden_dim, num_gc_layers, f_pad, h_pad)}


# ---------------------------------------------------------------------------
# GcnInfomax.forward
# ---------------------------------------------------------------------------
def gcn_infomax_forward(padded_params, x, edge_index, batch, num_graphs):
    num_nodes, num_features = x.shape
    _, hidden_dim, num_layers, f_pad, h_pad = padded_params["dims"]

    tn, n_pad = _pick_tiling(num_nodes)
    g_pad = _round_up(max(num_graphs, 8), 8)

    # Dense padded adjacency, built directly in bf16 (edge multiplicities <=256
    # stay exact); agg[i] = sum over edges (j->i) of x[j]  =>  A[dst, src] += 1.
    # TODO(synk): for very large sparse graphs replace the dense [N,N] A with a
    # full CSR gather kernel; block-sparse iteration below already skips
    # all-zero adjacency tiles.
    adj = jnp.zeros((n_pad, n_pad), jnp.bfloat16)
    adj = adj.at[edge_index[1], edge_index[0]].add(1.0)
    deg = jnp.zeros((n_pad, 1), jnp.float32)
    deg = deg.at[edge_index[1], 0].add(1.0)          # deg = A @ 1 (O(E), no N^2 pass)

    blk_ids, blk_cnt, maxk = _block_sparsity(edge_index, tn, n_pad)
    graph = {"adj": adj, "deg": deg, "blk_ids": blk_ids, "blk_cnt": blk_cnt,
             "maxk": maxk, "tn": tn, "n_pad": n_pad}

    x_pad = jnp.zeros((n_pad, f_pad), jnp.bfloat16)
    x_pad = x_pad.at[:num_nodes, :num_features].set(x.astype(jnp.bfloat16))

    onehot = (batch[:, None] ==
              jnp.arange(g_pad, dtype=batch.dtype)[None, :]).astype(jnp.float32)
    pool_mat = jnp.zeros((g_pad, n_pad), jnp.bfloat16)
    pool_mat = pool_mat.at[:, :num_nodes].set(onehot.T.astype(jnp.bfloat16))

    pos_mask = jnp.zeros((n_pad, g_pad), jnp.float32).at[:num_nodes, :].set(onehot)
    valid = jnp.zeros((n_pad, g_pad), jnp.float32)
    valid = valid.at[:num_nodes, :num_graphs].set(1.0)
    neg_mask = valid - pos_mask          # zero on padded rows / padded graph cols

    # ---- Encoder: stacked GIN layers; BatchNorm hoisted out of the A@x
    # reduction (affine commute) and its statistics fused into the conv.
    h = x_pad
    mean = jnp.zeros((1, f_pad), jnp.float32)     # identity BN for the raw input
    istd = jnp.ones((1, f_pad), jnp.float32)
    h_list, mean_list, istd_list = [], [], []
    for (w1, b1, w2, b2) in padded_params["gin"]:
        h, psum, psq = gin_conv(graph, h, mean, istd, w1, b1, w2, b2, num_nodes)
        mean, istd = _bn_mean_istd(psum, psq, num_nodes)
        h_list.append(h)
        mean_list.append(mean)
        istd_list.append(istd)

    # Fused: BN + concat -> M tile (VMEM only) + global_add_pool + local_d FF.
    l_enc, y = build_local_and_pool(graph, pool_mat, h_list, mean_list, istd_list,
                                    padded_params["local_d"], g_pad)

    g_enc = ff_apply(y.astype(jnp.bfloat16), padded_params["global_d"])

    loss = local_global_loss(l_enc, g_enc, pos_mask, neg_mask,
                             num_nodes, num_graphs, tn)

    # TODO(synk): args.prior branch (stochastic torch.rand_like +
    # PriorDiscriminator) modeled as prior=False -> PRIOR = 0.
    return loss


if __name__ == "__main__":
    num_nodes = 200            # pads to 256 -> 2 row tiles, exercises masking
    num_features = 16
    hidden_dim = 32
    num_gc_layers = 3
    num_graphs = 4
    per_graph = num_nodes // num_graphs
    edges_per_graph = 64

    key = jax.random.PRNGKey(0)
    k_x, k_src, k_dst, k_params = jax.random.split(key, 4)

    x = jax.random.normal(k_x, (num_nodes, num_features), jnp.float32)
    batch = jnp.repeat(jnp.arange(num_graphs, dtype=jnp.int32), per_graph)

    num_edges = num_graphs * edges_per_graph
    local_src = jax.random.randint(k_src, (num_edges,), 0, per_graph)
    local_dst = jax.random.randint(k_dst, (num_edges,), 0, per_graph)
    graph_of_edge = jnp.repeat(jnp.arange(num_graphs, dtype=jnp.int32),
                               edges_per_graph)
    edge_index = jnp.stack([local_src + graph_of_edge * per_graph,
                            local_dst + graph_of_edge * per_graph]).astype(jnp.int32)

    params = init_params(k_params, num_features, hidden_dim, num_gc_layers)
    padded = pad_params(params, num_features, hidden_dim, num_gc_layers)

    loss = gcn_infomax_forward(padded, x, edge_index, batch, num_graphs)
    jax.block_until_ready(loss)
    assert loss.shape == () and bool(jnp.isfinite(loss))
    print("KERNEL_OK")
</pallas_src>

<mosaic_0001>
module attributes {stable_mosaic.version = 11 : i64} {
  func.func @_probe_kernel(%arg0: i32, %arg1: memref<8x128xf32, #tpu.memory_space<vmem>>, %arg2: memref<8x128xf32, #tpu.memory_space<vmem>>) attributes {dimension_semantics = [#tpu.dimension_semantics<arbitrary>], iteration_bounds = array<i64: 2>, scalar_prefetch = 0 : i64, scratch_operands = 0 : i64, tpu.core_type = #tpu.core_type<tc>, window_params = [{pipeline_mode = #tpu.pipeline_mode<synchronous>, transform_indices = @transform_0, window_bounds = array<i64: 8, 128>}, {transform_indices = @transform_1, window_bounds = array<i64: 8, 128>}]} {
    %c0 = arith.constant 0 : index
    %c0_0 = arith.constant 0 : index
    %0 = vector.load %arg1[%c0, %c0_0] : memref<8x128xf32, #tpu.memory_space<vmem>>, vector<8x128xf32>
    %cst = arith.constant 1.000000e+00 : f32
    %1 = vector.broadcast %cst : f32 to vector<8x128xf32>
    %2 = arith.addf %0, %1 : vector<8x128xf32>
    %c0_1 = arith.constant 0 : index
    %c0_2 = arith.constant 0 : index
    %3 = vector.load %arg2[%c0_1, %c0_2] : memref<8x128xf32, #tpu.memory_space<vmem>>, vector<8x128xf32>
    tpu.vector_store %arg2[%c0_1, %c0_2], %2 {strides = array<i32>} : memref<8x128xf32, #tpu.memory_space<vmem>>, vector<8x128xf32>,
    return
  }
  func.func @transform_0(%arg0: i32) -> (i32, i32) {
    %c0_i32 = arith.constant 0 : i32
    %c0_i32_0 = arith.constant 0 : i32
    %c0_i32_1 = arith.constant 0 : i32
    return %c0_i32, %c0_i32_0 : i32, i32
  }
  func.func @transform_1(%arg0: i32) -> (i32, i32) {
    %c0_i32 = arith.constant 0 : i32
    %c0_i32_0 = arith.constant 0 : i32
    return %arg0, %c0_i32 : i32, i32
  }
}

module attributes {stable_mosaic.version = 11 : i64} {
  func.func @kernel(%arg0: i32, %arg1: i32, %arg2: memref<2x2xi32, #tpu.memory_space<smem>>, %arg3: memref<2xi32, #tpu.memory_space<smem>>, %arg4: memref<128x128xbf16, #tpu.memory_space<vmem>>, %arg5: memref<128x128xbf16, #tpu.memory_space<vmem>>, %arg6: memref<128x128xbf16, #tpu.memory_space<vmem>>, %arg7: memref<128x1xf32, #tpu.memory_space<vmem>>, %arg8: memref<1x128xf32, #tpu.memory_space<vmem>>, %arg9: memref<1x128xf32, #tpu.memory_space<vmem>>, %arg10: memref<128x128xbf16, #tpu.memory_space<vmem>>, %arg11: memref<1x128xf32, #tpu.memory_space<vmem>>, %arg12: memref<128x128xbf16, #tpu.memory_space<vmem>>, %arg13: memref<1x128xf32, #tpu.memory_space<vmem>>, %arg14: memref<128x128xbf16, #tpu.memory_space<vmem>>, %arg15: memref<1x1x128xf32, #tpu.memory_space<vmem>>, %arg16: memref<1x1x128xf32, #tpu.memory_space<vmem>>, %arg17: memref<128x128xf32, #tpu.memory_space<vmem>>) attributes {dimension_semantics = [#tpu.dimension_semantics<parallel>, #tpu.dimension_semantics<arbitrary>], iteration_bounds = array<i64: 2, 2>, scalar_prefetch = 2 : i64, scratch_operands = 1 : i64, tpu.core_type = #tpu.core_type<tc>, window_params = [{transform_indices = @transform_0, window_bounds = array<i64: 128, 128>}, {transform_indices = @transform_1, window_bounds = array<i64: 128, 128>}, {transform_indices = @transform_2, window_bounds = array<i64: 128, 128>}, {transform_indices = @transform_3, window_bounds = array<i64: 128, 1>}, {pipeline_mode = #tpu.pipeline_mode<synchronous>, transform_indices = @transform_4, window_bounds = array<i64: 1, 128>}, {pipeline_mode = #tpu.pipeline_mode<synchronous>, transform_indices = @transform_5, window_bounds = array<i64: 1, 128>}, {pipeline_mode = #tpu.pipeline_mode<synchronous>, transform_indices = @transform_6, window_bounds = array<i64: 128, 128>}, {pipeline_mode = #tpu.pipeline_mode<synchronous>, transform_indices = @transform_7, window_bounds = array<i64: 1, 128>}, {pipeline_mode = #tpu.pipeline_mode<synchronous>, transform_indices = @transform_8, window_bounds = array<i64: 128, 128>}, {pipeline_mode = #tpu.pipeline_mode<synchronous>, transform_indices = @transform_9, window_bounds = array<i64: 1, 128>}, {transform_indices = @transform_10, window_bounds = array<i64: 128, 128>}, {transform_indices = @transform_11, window_bounds = array<i64: 1, 1, 128>}, {transform_indices = @transform_12, window_bounds = array<i64: 1, 1, 128>}]} {
    %c0_i32 = arith.constant 0 : i32
    %0 = arith.cmpi eq, %arg1, %c0_i32 : i32
    %1 = arith.extui %0 : i1 to i32
    %c0_i32_0 = arith.constant 0 : i32
    %2 = arith.cmpi ne, %1, %c0_i32_0 : i32
    scf.if %2 {
      %cst = arith.constant 0.000000e+00 : f32
      %11 = vector.broadcast %cst : f32 to vector<128x128xf32>
      %c0 = arith.constant 0 : index
      %c0_3 = arith.constant 0 : index
      %12 = vector.load %arg17[%c0, %c0_3] : memref<128x128xf32, #tpu.memory_space<vmem>>, vector<128x128xf32>
      tpu.vector_store %arg17[%c0, %c0_3], %11 {strides = array<i32>} : memref<128x128xf32, #tpu.memory_space<vmem>>, vector<128x128xf32>,
    } else {
    }
    %3 = arith.index_cast %arg0 : i32 to index
    %4 = memref.load %arg3[%3] : memref<2xi32, #tpu.memory_space<smem>>
    %5 = arith.cmpi slt, %arg1, %4 : i32
    %6 = arith.extui %5 : i1 to i32
    %c0_i32_1 = arith.constant 0 : i32
    %7 = arith.cmpi ne, %6, %c0_i32_1 : i32
    scf.if %7 {
      %c0 = arith.constant 0 : index
      %c0_3 = arith.constant 0 : index
      %11 = vector.load %arg17[%c0, %c0_3] : memref<128x128xf32, #tpu.memory_space<vmem>>, vector<128x128xf32>
      %c0_4 = arith.constant 0 : index
      %c0_5 = arith.constant 0 : index
      %12 = vector.load %arg4[%c0_4, %c0_5] : memref<128x128xbf16, #tpu.memory_space<vmem>>, vector<128x128xbf16>
      %c0_6 = arith.constant 0 : index
      %c0_7 = arith.constant 0 : index
      %13 = vector.load %arg5[%c0_6, %c0_7] : memref<128x128xbf16, #tpu.memory_space<vmem>>, vector<128x128xbf16>
      %cst = arith.constant dense<0.000000e+00> : vector<128x128xf32>
      %14 = tpu.matmul %12, %13, %cst {dimension_numbers = #tpu.dot_dimension_numbers<[1], [0], [0], [1], [0, 0, 1, 1], [], []>} : vector<128x128xbf16>, vector<128x128xbf16>, vector<128x128xf32> -> vector<128x128xf32>
      %15 = arith.addf %11, %14 : vector<128x128xf32>
      %c0_8 = arith.constant 0 : index
      %c0_9 = arith.constant 0 : index
      %16 = vector.load %arg17[%c0_8, %c0_9] : memref<128x128xf32, #tpu.memory_space<vmem>>, vector<128x128xf32>
      tpu.vector_store %arg17[%c0_8, %c0_9], %15 {strides = array<i32>} : memref<128x128xf32, #tpu.memory_space<vmem>>, vector<128x128xf32>,
    } else {
    }
    %c1_i32 = arith.constant 1 : i32
    %8 = arith.cmpi eq, %arg1, %c1_i32 : i32
    %9 = arith.extui %8 : i1 to i32
    %c0_i32_2 = arith.constant 0 : i32
    %10 = arith.cmpi ne, %9, %c0_i32_2 : i32
    scf.if %10 {
      %c0 = arith.constant 0 : index
      %c0_3 = arith.constant 0 : index
      %11 = vector.load %arg8[%c0, %c0_3] : memref<1x128xf32, #tpu.memory_space<vmem>>, vector<1x128xf32>
      %c0_4 = arith.constant 0 : index
      %c0_5 = arith.constant 0 : index
      %12 = vector.load %arg9[%c0_4, %c0_5] : memref<1x128xf32, #tpu.memory_space<vmem>>, vector<1x128xf32>
      %c0_6 = arith.constant 0 : index
      %c0_7 = arith.constant 0 : index
      %13 = vector.load %arg7[%c0_6, %c0_7] : memref<128x1xf32, #tpu.memory_space<vmem>>, vector<128x1xf32>
      %c0_8 = arith.constant 0 : index
      %c0_9 = arith.constant 0 : index
      %14 = vector.load %arg6[%c0_8, %c0_9] : memref<128x128xbf16, #tpu.memory_space<vmem>>, vector<128x128xbf16>
      %15 = arith.extf %14 : vector<128x128xbf16> to vector<128x128xf32>
      %c0_10 = arith.constant 0 : index
      %c0_11 = arith.constant 0 : index
      %16 = vector.load %arg17[%c0_10, %c0_11] : memref<128x128xf32, #tpu.memory_space<vmem>>, vector<128x128xf32>
      %17 = arith.addf %16, %15 : vector<128x128xf32>
      %cst = arith.constant 1.000000e+00 : f32
      %18 = vector.broadcast %cst : f32 to vector<128x1xf32>
      %19 = arith.addf %18, %13 : vector<128x1xf32>
      %20 = vector.broadcast %19 : vector<128x1xf32> to vector<128x128xf32>
      %21 = vector.broadcast %11 : vector<1x128xf32> to vector<128x128xf32>
      %22 = arith.mulf %20, %21 : vector<128x128xf32>
      %23 = arith.subf %17, %22 : vector<128x128xf32>
      %24 = vector.broadcast %12 : vector<1x128xf32> to vector<128x128xf32>
      %25 = arith.mulf %23, %24 : vector<128x128xf32>
      %26 = arith.truncf %25 : vector<128x128xf32> to vector<128x128xbf16>
      %c0_12 = arith.constant 0 : index
      %c0_13 = arith.constant 0 : index
      %27 = vector.load %arg10[%c0_12, %c0_13] : memref<128x128xbf16, #tpu.memory_space<vmem>>, vector<128x128xbf16>
      %cst_14 = arith.constant dense<0.000000e+00> : vector<128x128xf32>
      %28 = tpu.matmul %26, %27, %cst_14 {dimension_numbers = #tpu.dot_dimension_numbers<[1], [0], [0], [1], [0, 0, 1, 1], [], []>} : vector<128x128xbf16>, vector<128x128xbf16>, vector<128x128xf32> -> vector<128x128xf32>
      %c0_15 = arith.constant 0 : index
      %c0_16 = arith.constant 0 : index
      %29 = vector.load %arg11[%c0_15, %c0_16] : memref<1x128xf32, #tpu.memory_space<vmem>>, vector<1x128xf32>
      %30 = vector.broadcast %29 : vector<1x128xf32> to vector<128x128xf32>
      %31 = arith.addf %28, %30 : vector<128x128xf32>
      %cst_17 = arith.constant 0.000000e+00 : f32
      %32 = vector.broadcast %cst_17 : f32 to vector<128x128xf32>
      %33 = arith.maximumf %31, %32 : vector<128x128xf32>
      %34 = arith.truncf %33 : vector<128x128xf32> to vector<128x128xbf16>
      %c0_18 = arith.constant 0 : index
      %c0_19 = arith.constant 0 : index
      %35 = vector.load %arg12[%c0_18, %c0_19] : memref<128x128xbf16, #tpu.memory_space<vmem>>, vector<128x128xbf16>
      %cst_20 = arith.constant dense<0.000000e+00> : vector<128x128xf32>
      %36 = tpu.matmul %34, %35, %cst_20 {dimension_numbers = #tpu.dot_dimension_numbers<[1], [0], [0], [1], [0, 0, 1, 1], [], []>} : vector<128x128xbf16>, vector<128x128xbf16>, vector<128x128xf32> -> vector<128x128xf32>
      %c0_21 = arith.constant 0 : index
      %c0_22 = arith.constant 0 : index
      %37 = vector.load %arg13[%c0_21, %c0_22] : memref<1x128xf32, #tpu.memory_space<vmem>>, vector<1x128xf32>
      %38 = vector.broadcast %37 : vector<1x128xf32> to vector<128x128xf32>
      %39 = arith.addf %36, %38 : vector<128x128xf32>
      %cst_23 = arith.constant 0.000000e+00 : f32
      %40 = vector.broadcast %cst_23 : f32 to vector<128x128xf32>
      %41 = arith.maximumf %39, %40 : vector<128x128xf32>
      %42 = arith.truncf %41 : vector<128x128xf32> to vector<128x128xbf16>
      %c0_24 = arith.constant 0 : index
      %c0_25 = arith.constant 0 : index
      %43 = vector.load %arg14[%c0_24, %c0_25] : memref<128x128xbf16, #tpu.memory_space<vmem>>, vector<128x128xbf16>
      tpu.vector_store %arg14[%c0_24, %c0_25], %42 {strides = array<i32>} : memref<128x128xbf16, #tpu.memory_space<vmem>>, vector<128x128xbf16>,
      %44 = tpu.iota {dimensions = array<i32: 0>} : vector<128x1xi32>
      %c128_i32 = arith.constant 128 : i32
      %45 = arith.muli %arg0, %c128_i32 : i32
      %46 = vector.broadcast %45 : i32 to vector<128x1xi32>
      %47 = arith.addi %44, %46 : vector<128x1xi32>
      %c200_i32 = arith.constant 200 : i32
      %48 = vector.broadcast %c200_i32 : i32 to vector<128x1xi32>
      %49 = arith.cmpi slt, %47, %48 : vector<128x1xi32>
      %50 = arith.extui %49 : vector<128x1xi1> to vector<128x1xi32>
      %51 = arith.sitofp %50 : vector<128x1xi32> to vector<128x1xf32>
      %52 = vector.broadcast %51 : vector<128x1xf32> to vector<128x128xf32>
      %53 = arith.mulf %41, %52 : vector<128x128xf32>
      %cst_26 = arith.constant dense<0.000000e+00> : vector<128xf32>
      %54 = vector.multi_reduction <add>, %53, %cst_26 [0] : vector<128x128xf32> to vector<128xf32>
      %55 = vector.shape_cast %54 : vector<128xf32> to vector<1x128xf32>
      %56 = vector.shape_cast %55 : vector<1x128xf32> to vector<1x1x128xf32>
      %c0_27 = arith.constant 0 : index
      %c0_28 = arith.constant 0 : index
      %c0_29 = arith.constant 0 : index
      %57 = vector.load %arg15[%c0_27, %c0_28, %c0_29] : memref<1x1x128xf32, #tpu.memory_space<vmem>>, vector<1x1x128xf32>
      tpu.vector_store %arg15[%c0_27, %c0_28, %c0_29], %56 {strides = array<i32>} : memref<1x1x128xf32, #tpu.memory_space<vmem>>, vector<1x1x128xf32>,
      %58 = arith.mulf %53, %53 : vector<128x128xf32>
      %cst_30 = arith.constant dense<0.000000e+00> : vector<128xf32>
      %59 = vector.multi_reduction <add>, %58, %cst_30 [0] : vector<128x128xf32> to vector<128xf32>
      %60 = vector.shape_cast %59 : vector<128xf32> to vector<1x128xf32>
      %61 = vector.shape_cast %60 : vector<1x128xf32> to vector<1x1x128xf32>
      %c0_31 = arith.constant 0 : index
      %c0_32 = arith.constant 0 : index
      %c0_33 = arith.constant 0 : index
      %62 = vector.load %arg16[%c0_31, %c0_32, %c0_33] : memref<1x1x128xf32, #tpu.memory_space<vmem>>, vector<1x1x128xf32>
      tpu.vector_store %arg16[%c0_31, %c0_32, %c0_33], %61 {strides = array<i32>} : memref<1x1x128xf32, #tpu.memory_space<vmem>>, vector<1x1x128xf32>,
    } else {
    }
    return
  }
  func.func @transform_0(%arg0: i32, %arg1: i32, %arg2: memref<2x2xi32, #tpu.memory_space<smem>>, %arg3: memref<2xi32, #tpu.memory_space<smem>>) -> (i32, i32) {
    %0 = arith.index_cast %arg0 : i32 to index
    %1 = arith.index_cast %arg1 : i32 to index
    %2 = memref.load %arg2[%0, %1] : memref<2x2xi32, #tpu.memory_space<smem>>
    %c0_i32 = arith.constant 0 : i32
    return %arg0, %2 : i32, i32
  }
  func.func @transform_1(%arg0: i32, %arg1: i32, %arg2: memref<2x2xi32, #tpu.memory_space<smem>>, %arg3: memref<2xi32, #tpu.memory_space<smem>>) -> (i32, i32) {
    %0 = arith.index_cast %arg0 : i32 to index
    %1 = arith.index_cast %arg1 : i32 to index
    %2 = memref.load %arg2[%0, %1] : memref<2x2xi32, #tpu.memory_space<smem>>
    %c0_i32 = arith.constant 0 : i32
    %c0_i32_0 = arith.constant 0 : i32
    return %2, %c0_i32 : i32, i32
  }
  func.func @transform_2(%arg0: i32, %arg1: i32, %arg2: memref<2x2xi32, #tpu.memory_space<smem>>, %arg3: memref<2xi32, #tpu.memory_space<smem>>) -> (i32, i32) {
    %c0_i32 = arith.constant 0 : i32
    %c0_i32_0 = arith.constant 0 : i32
    return %arg0, %c0_i32 : i32, i32
  }
  func.func @transform_3(%arg0: i32, %arg1: i32, %arg2: memref<2x2xi32, #tpu.memory_space<smem>>, %arg3: memref<2xi32, #tpu.memory_space<smem>>) -> (i32, i32) {
    %c0_i32 = arith.constant 0 : i32
    %c0_i32_0 = arith.constant 0 : i32
    return %arg0, %c0_i32 : i32, i32
  }
  func.func @transform_4(%arg0: i32, %arg1: i32, %arg2: memref<2x2xi32, #tpu.memory_space<smem>>, %arg3: memref<2xi32, #tpu.memory_space<smem>>) -> (i32, i32) {
    %c0_i32 = arith.constant 0 : i32
    %c0_i32_0 = arith.constant 0 : i32
    %c0_i32_1 = arith.constant 0 : i32
    return %c0_i32, %c0_i32_0 : i32, i32
  }
  func.func @transform_5(%arg0: i32, %arg1: i32, %arg2: memref<2x2xi32, #tpu.memory_space<smem>>, %arg3: memref<2xi32, #tpu.memory_space<smem>>) -> (i32, i32) {
    %c0_i32 = arith.constant 0 : i32
    %c0_i32_0 = arith.constant 0 : i32
    %c0_i32_1 = arith.constant 0 : i32
    return %c0_i32, %c0_i32_0 : i32, i32
  }
  func.func @transform_6(%arg0: i32, %arg1: i32, %arg2: memref<2x2xi32, #tpu.memory_space<smem>>, %arg3: memref<2xi32, #tpu.memory_space<smem>>) -> (i32, i32) {
    %c0_i32 = arith.constant 0 : i32
    %c0_i32_0 = arith.constant 0 : i32
    %c0_i32_1 = arith.constant 0 : i32
    return %c0_i32, %c0_i32_0 : i32, i32
  }
  func.func @transform_7(%arg0: i32, %arg1: i32, %arg2: memref<2x2xi32, #tpu.memory_space<smem>>, %arg3: memref<2xi32, #tpu.memory_space<smem>>) -> (i32, i32) {
    %c0_i32 = arith.constant 0 : i32
    %c0_i32_0 = arith.constant 0 : i32
    %c0_i32_1 = arith.constant 0 : i32
    return %c0_i32, %c0_i32_0 : i32, i32
  }
  func.func @transform_8(%arg0: i32, %arg1: i32, %arg2: memref<2x2xi32, #tpu.memory_space<smem>>, %arg3: memref<2xi32, #tpu.memory_space<smem>>) -> (i32, i32) {
    %c0_i32 = arith.constant 0 : i32
    %c0_i32_0 = arith.constant 0 : i32
    %c0_i32_1 = arith.constant 0 : i32
    return %c0_i32, %c0_i32_0 : i32, i32
  }
  func.func @transform_9(%arg0: i32, %arg1: i32, %arg2: memref<2x2xi32, #tpu.memory_space<smem>>, %arg3: memref<2xi32, #tpu.memory_space<smem>>) -> (i32, i32) {
    %c0_i32 = arith.constant 0 : i32
    %c0_i32_0 = arith.constant 0 : i32
    %c0_i32_1 = arith.constant 0 : i32
    return %c0_i32, %c0_i32_0 : i32, i32
  }
  func.func @transform_10(%arg0: i32, %arg1: i32, %arg2: memref<2x2xi32, #tpu.memory_space<smem>>, %arg3: memref<2xi32, #tpu.memory_space<smem>>) -> (i32, i32) {
    %c0_i32 = arith.constant 0 : i32
    %c0_i32_0 = arith.constant 0 : i32
    return %arg0, %c0_i32 : i32, i32
  }
  func.func @transform_11(%arg0: i32, %arg1: i32, %arg2: memref<2x2xi32, #tpu.memory_space<smem>>, %arg3: memref<2xi32, #tpu.memory_space<smem>>) -> (i32, i32, i32) {
    %c0_i32 = arith.constant 0 : i32
    %c0_i32_0 = arith.constant 0 : i32
    %c0_i32_1 = arith.constant 0 : i32
    return %arg0, %c0_i32, %c0_i32_0 : i32, i32, i32
  }
  func.func @transform_12(%arg0: i32, %arg1: i32, %arg2: memref<2x2xi32, #tpu.memory_space<smem>>, %arg3: memref<2xi32, #tpu.memory_space<smem>>) -> (i32, i32, i32) {
    %c0_i32 = arith.constant 0 : i32
    %c0_i32_0 = arith.constant 0 : i32
    %c0_i32_1 = arith.constant 0 : i32
    return %arg0, %c0_i32, %c0_i32_0 : i32, i32, i32
  }
}

</mosaic_0001>

<llo_original>
// kernel: tpu_custom_call.1
$region0: #{tpu_custom_call.1}
  #allocation0 [shape = 'u32[]', space=smem, size = 0x4, offset = 0x4, fixed_abs, tag = 'smem constant byte address 0x4 - core index']
  #allocation1 [shape = 'u32[72,128]{1,0:T(1,128)}', space=vmem, size = 0x9000, scoped, tag = 'internal scratch']
  %s0 = inlined_call_operand.hbm [shape: f32[8,128], index: 0, kind: input, shape index: {}]
  %s1 = inlined_call_operand.hbm [shape: f32[16,128], index: 1, kind: output, shape index: {}]
  %s2 = sld [smem:[#allocation0]]
  $region41: #{tpu_custom_call.1} parent=0
    _
  %s4 = ssub.s32 1, %s2
  %s5 = scalar_select 0, %s4, %s2
  $region1: #{tpu_custom_call.1} parent=0
    #allocation2 [shape = 'u8[4096]{0}', space=vmem, size = 0x1000, scoped, tag = 'input window, operand 0, single buffered']
    #allocation3 [shape = 's32[2]{0}', space=sflag, size = 0x8, scoped, tag = 'scoped memory for tpu_custom_call.1']
    #allocation4 [shape = 's32[2]{0}', space=sflag, size = 0x8, scoped, tag = 'scoped memory for tpu_custom_call.1']
    #allocation5 [shape = 'u8[8192]{0}', space=vmem, size = 0x2000, scoped, tag = 'output window, operand 0']
    %6 = vsyncpa [#allocation3], 0
    %7 = vsyncpa [#allocation4], 0
    %s8 = scalar_lea.sflag [#allocation4], 1
    %9 = vsyncpa %s8, 0
    loop: start=0, step=1, limit=4
    $region2: #{tpu_custom_call.1} parent=1 // loop_pre_header
      _
    $region3: #{tpu_custom_call.1} parent=1 // loop_header
      %s11 = sphi 0, %s15
      %p12 = scmp.ge.s32.totalorder %s11, 4
      %s19 = sphi 0, %s19
      %s21 = sphi 0, %s19
      %s22 = sphi 0, %s21
      %s36 = sphi 0, %s22
      %s42 = sphi 0, %s44
      %s45 = sphi 0, %s42
      %s46 = sphi 0, %s45
      %s62 = sphi 0, %s46
    $region4: #{tpu_custom_call.1} parent=1 // loop_header_branch
      %14 = sbr.rel (%p12) target = $region8
    $region5: #{tpu_custom_call.1} parent=1 // loop_body
      %s16 = ssub.s32 %s11, 1
      %s17 = ssub.s32 %s11, 2
      %s18 = sadd.s32 %s11, 1
      %s20 = sadd.s32 %s19, 1
      %p23 = scmp.eq.s32.totalorder %s11, 1
      %p24 = scmp.ne.s32.totalorder %s19, %s21
      %p25 = scmp.eq.s32.totalorder %s11, 0
      %p26 = por %p24, %p25
      %p27 = scmp.ne.s32.totalorder %s19, %s21
      %p28 = scmp.eq.s32.totalorder %s16, 1
      %p29 = por %p27, %p28
      %p30 = scmp.ne.s32.totalorder %s21, %s22
      %p31 = scmp.eq.s32.totalorder %s16, 0
      %p32 = por %p30, %p31
      %p33 = scmp.ne.s32.totalorder %s21, %s22
      %p34 = scmp.eq.s32.totalorder %s17, 1
      %p35 = por %p33, %p34
      %p37 = scmp.ne.s32.totalorder %s22, %s36
      %p38 = scmp.eq.s32.totalorder %s17, 0
      %p39 = por %p37, %p38
      %s40 = ssub.s32 %s11, %s18
      %p41 = scmp.eq.s32.totalorder %s40, 0
      %s43 = sadd.s32 %s42, 1
      %s44 = scalar_select %p41, %s42, %s43
      %p47 = pneg %p41
      %p48 = scmp.eq.s32.totalorder %s11, 1
      %p49 = por %p47, %p48
      %p50 = scmp.ne.s32.totalorder %s42, %s45
      %p51 = scmp.eq.s32.totalorder %s11, 0
      %p52 = por %p50, %p51
      %p53 = scmp.ne.s32.totalorder %s42, %s45
      %p54 = scmp.eq.s32.totalorder %s16, 1
      %p55 = por %p53, %p54
      %p56 = scmp.ne.s32.totalorder %s45, %s46
      %p57 = scmp.eq.s32.totalorder %s16, 0
      %p58 = por %p56, %p57
      %p59 = scmp.ne.s32.totalorder %s45, %s46
      %p60 = scmp.eq.s32.totalorder %s17, 1
      %p61 = por %p59, %p60
      %p63 = scmp.ne.s32.totalorder %s46, %s62
      %p64 = scmp.eq.s32.totalorder %s17, 0
      %p65 = por %p63, %p64
      %p66 = scmp.le.s32.totalorder 1, %s11
      %p67 = scmp.lt.s32.totalorder %s11, 3
      %p68 = pnand %p66, %p67
      %p69 = pneg %p68
      // Predicated region
      $region9: #{tpu_custom_call.1} parent=5 // pred_check
        _
      $region10: #{tpu_custom_call.1} parent=5 // pred_check_branch
        %71 = sbr.rel (%p68) target = $region12
      $region11: #{tpu_custom_call.1} parent=5 // pred_region
        %s72 = ssub.s32 %s11, 1
        // Predicated region
        $region13: #{tpu_custom_call.1} parent=11 // pred_check
          %p73 = pneg %p32
        $region14: #{tpu_custom_call.1} parent=11 // pred_check_branch
          %75 = sbr.rel (%p73) target = $region16
        $region15: #{tpu_custom_call.1} parent=11 // pred_region
          %77 = vsyncadd [#allocation3], 0
          %s79 = sshll.u32 %s0, 4
          %s80 = int_to_ptr.hbm [resolvable:$true] %s79
          %s81 = sshll.u32 [#allocation2], 4
          %s82 = int_to_ptr.vmem [resolvable:$true] %s81
          %84 = dma.hbm_to_vmem [thread:$0]  %s80, 128, %s82, [#allocation3]
        $region16: #{tpu_custom_call.1} parent=11 // pred_fallthru
          _
      $region12: #{tpu_custom_call.1} parent=5 // pred_fallthru
        _
      %p85 = scmp.lt.s32.totalorder %s11, 2
      // Predicated region
      $region17: #{tpu_custom_call.1} parent=5 // pred_check
        %p86 = pneg %p85
      $region18: #{tpu_custom_call.1} parent=5 // pred_check_branch
        %88 = sbr.rel (%p86) target = $region20
      $region19: #{tpu_custom_call.1} parent=5 // pred_region
        _
      $region20: #{tpu_custom_call.1} parent=5 // pred_fallthru
        _
      %p89 = scmp.le.s32.totalorder 1, %s11
      %p90 = scmp.lt.s32.totalorder %s11, 3
      %p91 = pnand %p89, %p90
      %p92 = pneg %p91
      // Predicated region
      $region21: #{tpu_custom_call.1} parent=5 // pred_check
        _
      $region22: #{tpu_custom_call.1} parent=5 // pred_check_branch
        %94 = sbr.rel (%p91) target = $region24
      $region23: #{tpu_custom_call.1} parent=5 // pred_region
        %s95 = ssub.s32 %s11, 1
        // Predicated region
        $region25: #{tpu_custom_call.1} parent=23 // pred_check
          %p96 = pneg %p32
        $region26: #{tpu_custom_call.1} parent=23 // pred_check_branch
          %98 = sbr.rel (%p96) target = $region28
        $region27: #{tpu_custom_call.1} parent=23 // pred_region
          %100 = dma.done [#allocation3], 128
        $region28: #{tpu_custom_call.1} parent=23 // pred_fallthru
          _
        %p101 = pneg %p32
        %p102 = pneg %p29
        %p103 = pneg %p58
        %p104 = pneg %p55
        %s105 = sand.u32 %s45, 1
        %s106 = scalar_lea.sflag [#allocation4], %s105
        %s107 = sand.u32 %s45, 1
        %s108 = smul.addr %s107, 8
        %s109 = scalar_lea.vmem [#allocation5], %s108
        %v110 = vld [vmem:[#allocation2] sm:$0xff]
        %v111 = vadd.f32 %v110, 1.0
        %112 = vst [vmem:[%s109] sm:$0xff] %v111
        %s113 = sand.u32 %s45, 1
        %s114 = scalar_lea.sflag [#allocation4], %s113
        %s115 = sand.u32 %s45, 1
        %s116 = smul.addr %s115, 8
        %s117 = scalar_lea.vmem [#allocation5], %s116
        // Predicated region
        $region29: #{tpu_custom_call.1} parent=23 // pred_check
          %p118 = pneg %p55
        $region30: #{tpu_custom_call.1} parent=23 // pred_check_branch
          %120 = sbr.rel (%p118) target = $region32
        $region31: #{tpu_custom_call.1} parent=23 // pred_region
          %122 = vsyncadd %s114, 0
          %s123 = smul.addr %s16, 8
          %s124 = scalar_lea.hbm %s1, %s123
          %s126 = sshll.u32 %s117, 4
          %s127 = int_to_ptr.vmem [resolvable:$true] %s126
          %s128 = sshll.u32 %s124, 4
          %s129 = int_to_ptr.hbm [resolvable:$true] %s128
          %131 = dma.vmem_to_hbm [thread:$0]  %s127, 128, %s129, %s114
        $region32: #{tpu_custom_call.1} parent=23 // pred_fallthru
          _
      $region24: #{tpu_custom_call.1} parent=5 // pred_fallthru
        _
      %p132 = scmp.le.s32.totalorder 2, %s11
      // Predicated region
      $region33: #{tpu_custom_call.1} parent=5 // pred_check
        %p133 = pneg %p132
      $region34: #{tpu_custom_call.1} parent=5 // pred_check_branch
        %135 = sbr.rel (%p133) target = $region36
      $region35: #{tpu_custom_call.1} parent=5 // pred_region
        %s136 = ssub.s32 %s11, 2
        // Predicated region
        $region37: #{tpu_custom_call.1} parent=35 // pred_check
          %p137 = pneg %p61
        $region38: #{tpu_custom_call.1} parent=35 // pred_check_branch
          %139 = sbr.rel (%p137) target = $region40
        $region39: #{tpu_custom_call.1} parent=35 // pred_region
          %s140 = sand.u32 %s46, 1
          %s141 = scalar_lea.sflag [#allocation4], %s140
          %s142 = sand.u32 %s46, 1
          %s143 = smul.addr %s142, 8
          %s144 = scalar_lea.vmem [#allocation5], %s143
          %146 = dma.done %s141, 128
        $region40: #{tpu_custom_call.1} parent=35 // pred_fallthru
          _
      $region36: #{tpu_custom_call.1} parent=5 // pred_fallthru
        _
    $region6: #{tpu_custom_call.1} parent=1 // loop_footer
      %s15 = sadd.s32 1, %s11
    $region7: #{tpu_custom_call.1} parent=1 // loop_footer_branch
      %10 = sbr.rel target = $region3
    $region8: #{tpu_custom_call.1} parent=1 // loop_exit
      _
    %147 = vsyncpa [#allocation3], 1
    %s148 = scalar_lea.sflag [#allocation3], 1
    %149 = vsyncpa %s148, 1
    %150 = vsyncpa [#allocation4], 1
    %s151 = scalar_lea.sflag [#allocation4], 1
    %152 = vsyncpa %s151, 1

// kernel: tpu_custom_call.1
$region0: #{tpu_custom_call.1}
  #allocation0 [shape = 'u32[]', space=smem, size = 0x4, offset = 0x4, fixed_abs, tag = 'smem constant byte address 0x4 - core index']
  #allocation1 [shape = 'u32[72,128]{1,0:T(1,128)}', space=vmem, size = 0x9000, scoped, tag = 'internal scratch']
  #allocation2 [shape = 'f32[128,128]{1,0:T(8,128)}', space=vmem, size = 0x10000, scoped, tag = 'scratch operand']
  #allocation3 [shape = 's32[1]{0}', space=sflag, size = 0x4, scoped, tag = 'scoped memory for tpu_custom_call.1']
  #allocation4 [shape = 'u8[1024]{0}', space=smem, size = 0x400, scoped, tag = 'prefetched SMEM operand 0']
  #allocation5 [shape = 'u8[512]{0}', space=smem, size = 0x200, scoped, tag = 'prefetched SMEM operand 1']
  %s0 = inlined_call_operand.vmem [shape: s32[2,2], index: 0, kind: input, shape index: {}]
  %s1 = inlined_call_operand.vmem [shape: s32[2], index: 1, kind: input, shape index: {}]
  %s2 = inlined_call_operand.vmem [shape: bf16[256,256], index: 2, kind: input, shape index: {}]
  %s3 = inlined_call_operand.hbm [shape: bf16[256,128], index: 3, kind: input, shape index: {}]
  %s4 = inlined_call_operand.hbm [shape: bf16[256,128], index: 4, kind: input, shape index: {}]
  %s5 = inlined_call_operand.vmem [shape: f32[256,1], index: 5, kind: input, shape index: {}]
  %s6 = inlined_call_operand.vmem [shape: f32[1,128], index: 6, kind: input, shape index: {}]
  %s7 = inlined_call_operand.vmem [shape: f32[1,128], index: 7, kind: input, shape index: {}]
  %s8 = inlined_call_operand.hbm [shape: bf16[128,128], index: 8, kind: input, shape index: {}]
  %s9 = inlined_call_operand.vmem [shape: f32[1,128], index: 9, kind: input, shape index: {}]
  %s10 = inlined_call_operand.hbm [shape: bf16[128,128], index: 10, kind: input, shape index: {}]
  %s11 = inlined_call_operand.vmem [shape: f32[1,128], index: 11, kind: input, shape index: {}]
  %s12 = inlined_call_operand.hbm [shape: bf16[256,128], index: 12, kind: output, shape index: {0}]
  %s13 = inlined_call_operand.hbm [shape: f32[2,1,128], index: 13, kind: output, shape index: {1}]
  %s14 = inlined_call_operand.hbm [shape: f32[2,1,128], index: 14, kind: output, shape index: {2}]
  %15 = xla_tuple %s12, %s13, %s14
  %s16 = sld [smem:[#allocation0]]
  $region158: #{tpu_custom_call.1} parent=0
    _
  %s18 = ssub.s32 1, %s16
  %s19 = scalar_select 0, %s18, %s16
  %s21 = sshll.u32 %s0, 4
  %s22 = int_to_ptr.vmem [resolvable:$true] %s21
  %24 = dma.vmem_to_smem %s22, 32, [#allocation4], [#allocation3]
  %s26 = sshll.u32 %s1, 4
  %s27 = int_to_ptr.vmem [resolvable:$true] %s26
  %29 = dma.vmem_to_smem %s27, 16, [#allocation5], [#allocation3]
  %31 = dma.done [#allocation3], 48
  %32 = sfence
  $region1: #{tpu_custom_call.1} parent=0
    #allocation6 [shape = 'u8[65536]{0}', space=vmem, size = 0x10000, scoped, tag = 'input window, operand 2']
    #allocation7 [shape = 'u8[65536]{0}', space=vmem, size = 0x10000, scoped, tag = 'input window, operand 3']
    #allocation8 [shape = 's32[2]{0}', space=sflag, size = 0x8, scoped, tag = 'scoped memory for tpu_custom_call.1']
    #allocation9 [shape = 's32[2]{0}', space=sflag, size = 0x8, scoped, tag = 'scoped memory for tpu_custom_call.1']
    #allocation10 [shape = 'u8[65536]{0}', space=vmem, size = 0x10000, scoped, tag = 'input window, operand 4']
    #allocation11 [shape = 's32[2]{0}', space=sflag, size = 0x8, scoped, tag = 'scoped memory for tpu_custom_call.1']
    #allocation12 [shape = 'u8[32768]{0}', space=vmem, size = 0x8000, scoped, tag = 'input window, operand 8, single buffered']
    #allocation13 [shape = 'u8[32768]{0}', space=vmem, size = 0x8000, scoped, tag = 'input window, operand 10, single buffered']
    #allocation14 [shape = 's32[1]{0}', space=sflag, size = 0x4, scoped, tag = 'scoped memory for tpu_custom_call.1']
    #allocation15 [shape = 'u8[65536]{0}', space=vmem, size = 0x10000, scoped, tag = 'output window, operand 0']
    #allocation16 [shape = 'u8[1024]{0}', space=vmem, size = 0x400, scoped, tag = 'output window, operand 1']
    #allocation17 [shape = 's32[2]{0}', space=sflag, size = 0x8, scoped, tag = 'scoped memory for tpu_custom_call.1']
    #allocation18 [shape = 'u8[1024]{0}', space=vmem, size = 0x400, scoped, tag = 'output window, operand 2']
    %33 = vsyncpa [#allocation8], 0
    %s34 = scalar_lea.sflag [#allocation8], 1
    %35 = vsyncpa %s34, 0
    %36 = vsyncpa [#allocation11], 0
    %s37 = scalar_lea.sflag [#allocation11], 1
    %38 = vsyncpa %s37, 0
    %39 = vsyncpa [#allocation14], 0
    %40 = vsyncpa [#allocation9], 0
    %s41 = scalar_lea.sflag [#allocation9], 1
    %42 = vsyncpa %s41, 0
    %43 = vsyncpa [#allocation17], 0
    %s44 = scalar_lea.sflag [#allocation17], 1
    %45 = vsyncpa %s44, 0
    loop: start=0, step=1, limit=6
    $region2: #{tpu_custom_call.1} parent=1 // loop_pre_header
      _
    $region3: #{tpu_custom_call.1} parent=1 // loop_header
      %s47 = sphi 0, %s51
      %p48 = scmp.ge.s32.totalorder %s47, 6
      %s54 = sphi 0, %s66
      %s55 = sphi 0, %s62
      %s56 = sphi 0, %s54
      %s57 = sphi 0, %s55
      %s58 = sphi 0, %s56
      %s59 = sphi 0, %s57
      %s87 = sphi 0, %s89
      %s90 = sphi 0, %s87
      %s91 = sphi 0, %s90
      %s107 = sphi 0, %s91
      %s129 = sphi 0, %s131
      %s132 = sphi 0, %s129
      %s133 = sphi 0, %s132
      %s149 = sphi 0, %s133
      %s155 = sphi 0, %s157
      %s158 = sphi 0, %s155
      %s159 = sphi 0, %s158
      %s175 = sphi 0, %s159
      %s181 = sphi 0, %s183
      %s184 = sphi 0, %s181
      %s185 = sphi 0, %s184
      %s201 = sphi 0, %s185
      %s205 = sphi 0, %s205
      %s207 = sphi 0, %s205
      %s208 = sphi 0, %s207
      %s222 = sphi 0, %s208
      %s226 = sphi 0, %s226
      %s228 = sphi 0, %s226
      %s229 = sphi 0, %s228
      %s243 = sphi 0, %s229
      %s247 = sphi 0, %s247
      %s249 = sphi 0, %s247
      %s250 = sphi 0, %s249
      %s264 = sphi 0, %s250
      %s268 = sphi 0, %s268
      %s270 = sphi 0, %s268
      %s271 = sphi 0, %s270
      %s285 = sphi 0, %s271
      %s289 = sphi 0, %s289
      %s291 = sphi 0, %s289
      %s292 = sphi 0, %s291
      %s306 = sphi 0, %s292
      %s310 = sphi 0, %s310
      %s312 = sphi 0, %s310
      %s313 = sphi 0, %s312
      %s327 = sphi 0, %s313
      %s333 = sphi 0, %s335
      %s336 = sphi 0, %s333
      %s337 = sphi 0, %s336
      %s353 = sphi 0, %s337
      %s359 = sphi 0, %s361
      %s362 = sphi 0, %s359
      %s363 = sphi 0, %s362
      %s379 = sphi 0, %s363
      %s385 = sphi 0, %s387
      %s388 = sphi 0, %s385
      %s389 = sphi 0, %s388
      %s405 = sphi 0, %s389
    $region4: #{tpu_custom_call.1} parent=1 // loop_header_branch
      %50 = sbr.rel (%p48) target = $region8
    $region5: #{tpu_custom_call.1} parent=1 // loop_body
      %s52 = ssub.s32 %s47, 1
      %s53 = ssub.s32 %s47, 2
      %s60 = sadd.s32 1, %s55
      %p61 = scmp.ge.s32.totalorder %s60, 2
      %s62 = scalar_select %p61, 0, %s60
      %s63 = sadd.s32 1, %s54
      %s64 = scalar_select %p61, %s63, %s54
      %p65 = scmp.ge.s32.totalorder %s64, 2
      %s66 = scalar_select %p65, 0, %s64
      %s67 = sshra.s32 %s55, 7
      %s68 = sand.u32 %s55, 127
      %s69 = sadd.s32 %s67, %s54
      %s70 = smul.u32 %s69, 128
      %s71 = sshra.s32 %s55, 7
      %s72 = sand.u32 %s55, 127
      %s73 = sadd.s32 %s70, %s72
      %s74 = sld [smem:[#allocation4 + %s73]]
      %s75 = sshra.s32 %s62, 7
      %s76 = sand.u32 %s62, 127
      %s77 = sadd.s32 %s75, %s66
      %s78 = smul.u32 %s77, 128
      %s79 = sshra.s32 %s62, 7
      %s80 = sand.u32 %s62, 127
      %s81 = sadd.s32 %s78, %s80
      %s82 = sld [smem:[#allocation4 + %s81]]
      %s83 = ssub.s32 %s54, %s66
      %s84 = ssub.s32 %s74, %s82
      %s85 = sor.u32 %s83, %s84
      %p86 = scmp.eq.s32.totalorder %s85, 0
      %s88 = sadd.s32 %s87, 1
      %s89 = scalar_select %p86, %s87, %s88
      %p92 = pneg %p86
      %p93 = scmp.eq.s32.totalorder %s47, 3
      %p94 = por %p92, %p93
      %p95 = scmp.ne.s32.totalorder %s87, %s90
      %p96 = scmp.eq.s32.totalorder %s47, 0
      %p97 = por %p95, %p96
      %p98 = scmp.ne.s32.totalorder %s87, %s90
      %p99 = scmp.eq.s32.totalorder %s52, 3
      %p100 = por %p98, %p99
      %p101 = scmp.ne.s32.totalorder %s90, %s91
      %p102 = scmp.eq.s32.totalorder %s52, 0
      %p103 = por %p101, %p102
      %p104 = scmp.ne.s32.totalorder %s90, %s91
      %p105 = scmp.eq.s32.totalorder %s53, 3
      %p106 = por %p104, %p105
      %p108 = scmp.ne.s32.totalorder %s91, %s107
      %p109 = scmp.eq.s32.totalorder %s53, 0
      %p110 = por %p108, %p109
      %s111 = sshra.s32 %s55, 7
      %s112 = sand.u32 %s55, 127
      %s113 = sadd.s32 %s111, %s54
      %s114 = smul.u32 %s113, 128
      %s115 = sshra.s32 %s55, 7
      %s116 = sand.u32 %s55, 127
      %s117 = sadd.s32 %s114, %s116
      %s118 = sld [smem:[#allocation4 + %s117]]
      %s119 = sshra.s32 %s62, 7
      %s120 = sand.u32 %s62, 127
      %s121 = sadd.s32 %s119, %s66
      %s122 = smul.u32 %s121, 128
      %s123 = sshra.s32 %s62, 7
      %s124 = sand.u32 %s62, 127
      %s125 = sadd.s32 %s122, %s124
      %s126 = sld [smem:[#allocation4 + %s125]]
      %s127 = ssub.s32 %s118, %s126
      %p128 = scmp.eq.s32.totalorder %s127, 0
      %s130 = sadd.s32 %s129, 1
      %s131 = scalar_select %p128, %s129, %s130
      %p134 = pneg %p128
      %p135 = scmp.eq.s32.totalorder %s47, 3
      %p136 = por %p134, %p135
      %p137 = scmp.ne.s32.totalorder %s129, %s132
      %p138 = scmp.eq.s32.totalorder %s47, 0
      %p139 = por %p137, %p138
      %p140 = scmp.ne.s32.totalorder %s129, %s132
      %p141 = scmp.eq.s32.totalorder %s52, 3
      %p142 = por %p140, %p141
      %p143 = scmp.ne.s32.totalorder %s132, %s133
      %p144 = scmp.eq.s32.totalorder %s52, 0
      %p145 = por %p143, %p144
      %p146 = scmp.ne.s32.totalorder %s132, %s133
      %p147 = scmp.eq.s32.totalorder %s53, 3
      %p148 = por %p146, %p147
      %p150 = scmp.ne.s32.totalorder %s133, %s149
      %p151 = scmp.eq.s32.totalorder %s53, 0
      %p152 = por %p150, %p151
      %s153 = ssub.s32 %s54, %s66
      %p154 = scmp.eq.s32.totalorder %s153, 0
      %s156 = sadd.s32 %s155, 1
      %s157 = scalar_select %p154, %s155, %s156
      %p160 = pneg %p154
      %p161 = scmp.eq.s32.totalorder %s47, 3
      %p162 = por %p160, %p161
      %p163 = scmp.ne.s32.totalorder %s155, %s158
      %p164 = scmp.eq.s32.totalorder %s47, 0
      %p165 = por %p163, %p164
      %p166 = scmp.ne.s32.totalorder %s155, %s158
      %p167 = scmp.eq.s32.totalorder %s52, 3
      %p168 = por %p166, %p167
      %p169 = scmp.ne.s32.totalorder %s158, %s159
      %p170 = scmp.eq.s32.totalorder %s52, 0
      %p171 = por %p169, %p170
      %p172 = scmp.ne.s32.totalorder %s158, %s159
      %p173 = scmp.eq.s32.totalorder %s53, 3
      %p174 = por %p172, %p173
      %p176 = scmp.ne.s32.totalorder %s159, %s175
      %p177 = scmp.eq.s32.totalorder %s53, 0
      %p178 = por %p176, %p177
      %s179 = ssub.s32 %s54, %s66
      %p180 = scmp.eq.s32.totalorder %s179, 0
      %s182 = sadd.s32 %s181, 1
      %s183 = scalar_select %p180, %s181, %s182
      %p186 = pneg %p180
      %p187 = scmp.eq.s32.totalorder %s47, 3
      %p188 = por %p186, %p187
      %p189 = scmp.ne.s32.totalorder %s181, %s184
      %p190 = scmp.eq.s32.totalorder %s47, 0
      %p191 = por %p189, %p190
      %p192 = scmp.ne.s32.totalorder %s181, %s184
      %p193 = scmp.eq.s32.totalorder %s52, 3
      %p194 = por %p192, %p193
      %p195 = scmp.ne.s32.totalorder %s184, %s185
      %p196 = scmp.eq.s32.totalorder %s52, 0
      %p197 = por %p195, %p196
      %p198 = scmp.ne.s32.totalorder %s184, %s185
      %p199 = scmp.eq.s32.totalorder %s53, 3
      %p200 = por %p198, %p199
      %p202 = scmp.ne.s32.totalorder %s185, %s201
      %p203 = scmp.eq.s32.totalorder %s53, 0
      %p204 = por %p202, %p203
      %s206 = sadd.s32 %s205, 1
      %p209 = scmp.eq.s32.totalorder %s47, 3
      %p210 = scmp.ne.s32.totalorder %s205, %s207
      %p211 = scmp.eq.s32.totalorder %s47, 0
      %p212 = por %p210, %p211
      %p213 = scmp.ne.s32.totalorder %s205, %s207
      %p214 = scmp.eq.s32.totalorder %s52, 3
      %p215 = por %p213, %p214
      %p216 = scmp.ne.s32.totalorder %s207, %s208
      %p217 = scmp.eq.s32.totalorder %s52, 0
      %p218 = por %p216, %p217
      %p219 = scmp.ne.s32.totalorder %s207, %s208
      %p220 = scmp.eq.s32.totalorder %s53, 3
      %p221 = por %p219, %p220
      %p223 = scmp.ne.s32.totalorder %s208, %s222
      %p224 = scmp.eq.s32.totalorder %s53, 0
      %p225 = por %p223, %p224
      %s227 = sadd.s32 %s226, 1
      %p230 = scmp.eq.s32.totalorder %s47, 3
      %p231 = scmp.ne.s32.totalorder %s226, %s228
      %p232 = scmp.eq.s32.totalorder %s47, 0
      %p233 = por %p231, %p232
      %p234 = scmp.ne.s32.totalorder %s226, %s228
      %p235 = scmp.eq.s32.totalorder %s52, 3
      %p236 = por %p234, %p235
      %p237 = scmp.ne.s32.totalorder %s228, %s229
      %p238 = scmp.eq.s32.totalorder %s52, 0
      %p239 = por %p237, %p238
      %p240 = scmp.ne.s32.totalorder %s228, %s229
      %p241 = scmp.eq.s32.totalorder %s53, 3
      %p242 = por %p240, %p241
      %p244 = scmp.ne.s32.totalorder %s229, %s243
      %p245 = scmp.eq.s32.totalorder %s53, 0
      %p246 = por %p244, %p245
      %s248 = sadd.s32 %s247, 1
      %p251 = scmp.eq.s32.totalorder %s47, 3
      %p252 = scmp.ne.s32.totalorder %s247, %s249
      %p253 = scmp.eq.s32.totalorder %s47, 0
      %p254 = por %p252, %p253
      %p255 = scmp.ne.s32.totalorder %s247, %s249
      %p256 = scmp.eq.s32.totalorder %s52, 3
      %p257 = por %p255, %p256
      %p258 = scmp.ne.s32.totalorder %s249, %s250
      %p259 = scmp.eq.s32.totalorder %s52, 0
      %p260 = por %p258, %p259
      %p261 = scmp.ne.s32.totalorder %s249, %s250
      %p262 = scmp.eq.s32.totalorder %s53, 3
      %p263 = por %p261, %p262
      %p265 = scmp.ne.s32.totalorder %s250, %s264
      %p266 = scmp.eq.s32.totalorder %s53, 0
      %p267 = por %p265, %p266
      %s269 = sadd.s32 %s268, 1
      %p272 = scmp.eq.s32.totalorder %s47, 3
      %p273 = scmp.ne.s32.totalorder %s268, %s270
      %p274 = scmp.eq.s32.totalorder %s47, 0
      %p275 = por %p273, %p274
      %p276 = scmp.ne.s32.totalorder %s268, %s270
      %p277 = scmp.eq.s32.totalorder %s52, 3
      %p278 = por %p276, %p277
      %p279 = scmp.ne.s32.totalorder %s270, %s271
      %p280 = scmp.eq.s32.totalorder %s52, 0
      %p281 = por %p279, %p280
      %p282 = scmp.ne.s32.totalorder %s270, %s271
      %p283 = scmp.eq.s32.totalorder %s53, 3
      %p284 = por %p282, %p283
      %p286 = scmp.ne.s32.totalorder %s271, %s285
      %p287 = scmp.eq.s32.totalorder %s53, 0
      %p288 = por %p286, %p287
      %s290 = sadd.s32 %s289, 1
      %p293 = scmp.eq.s32.totalorder %s47, 3
      %p294 = scmp.ne.s32.totalorder %s289, %s291
      %p295 = scmp.eq.s32.totalorder %s47, 0
      %p296 = por %p294, %p295
      %p297 = scmp.ne.s32.totalorder %s289, %s291
      %p298 = scmp.eq.s32.totalorder %s52, 3
      %p299 = por %p297, %p298
      %p300 = scmp.ne.s32.totalorder %s291, %s292
      %p301 = scmp.eq.s32.totalorder %s52, 0
      %p302 = por %p300, %p301
      %p303 = scmp.ne.s32.totalorder %s291, %s292
      %p304 = scmp.eq.s32.totalorder %s53, 3
      %p305 = por %p303, %p304
      %p307 = scmp.ne.s32.totalorder %s292, %s306
      %p308 = scmp.eq.s32.totalorder %s53, 0
      %p309 = por %p307, %p308
      %s311 = sadd.s32 %s310, 1
      %p314 = scmp.eq.s32.totalorder %s47, 3
      %p315 = scmp.ne.s32.totalorder %s310, %s312
      %p316 = scmp.eq.s32.totalorder %s47, 0
      %p317 = por %p315, %p316
      %p318 = scmp.ne.s32.totalorder %s310, %s312
      %p319 = scmp.eq.s32.totalorder %s52, 3
      %p320 = por %p318, %p319
      %p321 = scmp.ne.s32.totalorder %s312, %s313
      %p322 = scmp.eq.s32.totalorder %s52, 0
      %p323 = por %p321, %p322
      %p324 = scmp.ne.s32.totalorder %s312, %s313
      %p325 = scmp.eq.s32.totalorder %s53, 3
      %p326 = por %p324, %p325
      %p328 = scmp.ne.s32.totalorder %s313, %s327
      %p329 = scmp.eq.s32.totalorder %s53, 0
      %p330 = por %p328, %p329
      %s331 = ssub.s32 %s54, %s66
      %p332 = scmp.eq.s32.totalorder %s331, 0
      %s334 = sadd.s32 %s333, 1
      %s335 = scalar_select %p332, %s333, %s334
      %p338 = pneg %p332
      %p339 = scmp.eq.s32.totalorder %s47, 3
      %p340 = por %p338, %p339
      %p341 = scmp.ne.s32.totalorder %s333, %s336
      %p342 = scmp.eq.s32.totalorder %s47, 0
      %p343 = por %p341, %p342
      %p344 = scmp.ne.s32.totalorder %s333, %s336
      %p345 = scmp.eq.s32.totalorder %s52, 3
      %p346 = por %p344, %p345
      %p347 = scmp.ne.s32.totalorder %s336, %s337
      %p348 = scmp.eq.s32.totalorder %s52, 0
      %p349 = por %p347, %p348
      %p350 = scmp.ne.s32.totalorder %s336, %s337
      %p351 = scmp.eq.s32.totalorder %s53, 3
      %p352 = por %p350, %p351
      %p354 = scmp.ne.s32.totalorder %s337, %s353
      %p355 = scmp.eq.s32.totalorder %s53, 0
      %p356 = por %p354, %p355
      %s357 = ssub.s32 %s54, %s66
      %p358 = scmp.eq.s32.totalorder %s357, 0
      %s360 = sadd.s32 %s359, 1
      %s361 = scalar_select %p358, %s359, %s360
      %p364 = pneg %p358
      %p365 = scmp.eq.s32.totalorder %s47, 3
      %p366 = por %p364, %p365
      %p367 = scmp.ne.s32.totalorder %s359, %s362
      %p368 = scmp.eq.s32.totalorder %s47, 0
      %p369 = por %p367, %p368
      %p370 = scmp.ne.s32.totalorder %s359, %s362
      %p371 = scmp.eq.s32.totalorder %s52, 3
      %p372 = por %p370, %p371
      %p373 = scmp.ne.s32.totalorder %s362, %s363
      %p374 = scmp.eq.s32.totalorder %s52, 0
      %p375 = por %p373, %p374
      %p376 = scmp.ne.s32.totalorder %s362, %s363
      %p377 = scmp.eq.s32.totalorder %s53, 3
      %p378 = por %p376, %p377
      %p380 = scmp.ne.s32.totalorder %s363, %s379
      %p381 = scmp.eq.s32.totalorder %s53, 0
      %p382 = por %p380, %p381
      %s383 = ssub.s32 %s54, %s66
      %p384 = scmp.eq.s32.totalorder %s383, 0
      %s386 = sadd.s32 %s385, 1
      %s387 = scalar_select %p384, %s385, %s386
      %p390 = pneg %p384
      %p391 = scmp.eq.s32.totalorder %s47, 3
      %p392 = por %p390, %p391
      %p393 = scmp.ne.s32.totalorder %s385, %s388
      %p394 = scmp.eq.s32.totalorder %s47, 0
      %p395 = por %p393, %p394
      %p396 = scmp.ne.s32.totalorder %s385, %s388
      %p397 = scmp.eq.s32.totalorder %s52, 3
      %p398 = por %p396, %p397
      %p399 = scmp.ne.s32.totalorder %s388, %s389
      %p400 = scmp.eq.s32.totalorder %s52, 0
      %p401 = por %p399, %p400
      %p402 = scmp.ne.s32.totalorder %s388, %s389
      %p403 = scmp.eq.s32.totalorder %s53, 3
      %p404 = por %p402, %p403
      %p406 = scmp.ne.s32.totalorder %s389, %s405
      %p407 = scmp.eq.s32.totalorder %s53, 0
      %p408 = por %p406, %p407
      %p409 = scmp.le.s32.totalorder 1, %s47
      %p410 = scmp.lt.s32.totalorder %s47, 5
      %p411 = pnand %p409, %p410
      %p412 = pneg %p411
      // Predicated region
      $region9: #{tpu_custom_call.1} parent=5 // pred_check
        _
      $region10: #{tpu_custom_call.1} parent=5 // pred_check_branch
        %414 = sbr.rel (%p411) target = $region12
      $region11: #{tpu_custom_call.1} parent=5 // pred_region
        %s415 = ssub.s32 %s47, 1
        // Predicated region
        $region13: #{tpu_custom_call.1} parent=11 // pred_check
          %p416 = pneg %p218
        $region14: #{tpu_custom_call.1} parent=11 // pred_check_branch
          %418 = sbr.rel (%p416) target = $region16
        $region15: #{tpu_custom_call.1} parent=11 // pred_region
          _
        $region16: #{tpu_custom_call.1} parent=11 // pred_fallthru
          _
        // Predicated region
        $region17: #{tpu_custom_call.1} parent=11 // pred_check
          %p419 = pneg %p239
        $region18: #{tpu_custom_call.1} parent=11 // pred_check_branch
          %421 = sbr.rel (%p419) target = $region20
        $region19: #{tpu_custom_call.1} parent=11 // pred_region
          _
        $region20: #{tpu_custom_call.1} parent=11 // pred_fallthru
          _
        // Predicated region
        $region21: #{tpu_custom_call.1} parent=11 // pred_check
          %p422 = pneg %p260
        $region22: #{tpu_custom_call.1} parent=11 // pred_check_branch
          %424 = sbr.rel (%p422) target = $region24
        $region23: #{tpu_custom_call.1} parent=11 // pred_region
          %426 = vsyncadd [#allocation11], 0
          %s427 = sshll.u32 %s8, 4
          %s428 = int_to_ptr.hbm [resolvable:$true] %s427
          %s429 = sshll.u32 [#allocation12], 4
          %s430 = int_to_ptr.vmem [resolvable:$true] %s429
          %435 = dma.hbm_to_vmem [thread:$0]  %s428, 1024, %s430, [#allocation11], 64, 64, 4
        $region24: #{tpu_custom_call.1} parent=11 // pred_fallthru
          _
        // Predicated region
        $region25: #{tpu_custom_call.1} parent=11 // pred_check
          %p436 = pneg %p281
        $region26: #{tpu_custom_call.1} parent=11 // pred_check_branch
          %438 = sbr.rel (%p436) target = $region28
        $region27: #{tpu_custom_call.1} parent=11 // pred_region
          _
        $region28: #{tpu_custom_call.1} parent=11 // pred_fallthru
          _
        // Predicated region
        $region29: #{tpu_custom_call.1} parent=11 // pred_check
          %p439 = pneg %p302
        $region30: #{tpu_custom_call.1} parent=11 // pred_check_branch
          %441 = sbr.rel (%p439) target = $region32
        $region31: #{tpu_custom_call.1} parent=11 // pred_region
          %443 = vsyncadd [#allocation14], 0
          %s444 = sshll.u32 %s10, 4
          %s445 = int_to_ptr.hbm [resolvable:$true] %s444
          %s446 = sshll.u32 [#allocation13], 4
          %s447 = int_to_ptr.vmem [resolvable:$true] %s446
          %452 = dma.hbm_to_vmem [thread:$0]  %s445, 1024, %s447, [#allocation14], 64, 64, 4
        $region32: #{tpu_custom_call.1} parent=11 // pred_fallthru
          _
        // Predicated region
        $region33: #{tpu_custom_call.1} parent=11 // pred_check
          %p453 = pneg %p323
        $region34: #{tpu_custom_call.1} parent=11 // pred_check_branch
          %455 = sbr.rel (%p453) target = $region36
        $region35: #{tpu_custom_call.1} parent=11 // pred_region
          _
        $region36: #{tpu_custom_call.1} parent=11 // pred_fallthru
          _
      $region12: #{tpu_custom_call.1} parent=5 // pred_fallthru
        _
      %p456 = scmp.lt.s32.totalorder %s47, 4
      // Predicated region
      $region37: #{tpu_custom_call.1} parent=5 // pred_check
        %p457 = pneg %p456
      $region38: #{tpu_custom_call.1} parent=5 // pred_check_branch
        %459 = sbr.rel (%p457) target = $region40
      $region39: #{tpu_custom_call.1} parent=5 // pred_region
        // Predicated region
        $region41: #{tpu_custom_call.1} parent=39 // pred_check
          %p460 = pneg %p97
        $region42: #{tpu_custom_call.1} parent=39 // pred_check_branch
          %462 = sbr.rel (%p460) target = $region44
        $region43: #{tpu_custom_call.1} parent=39 // pred_region
          %s463 = sand.u32 %s87, 1
          %s464 = sand.u32 %s87, 1
          %s465 = smul.addr %s464, 64
          %s466 = scalar_lea.vmem [#allocation6], %s465
          %s467 = sshra.s32 %s55, 7
          %s468 = sand.u32 %s55, 127
          %s469 = sadd.s32 %s467, %s54
          %s470 = smul.u32 %s469, 128
          %s471 = sshra.s32 %s55, 7
          %s472 = sand.u32 %s55, 127
          %s473 = sadd.s32 %s470, %s472
          %s474 = sld [smem:[#allocation4 + %s473]]
          %s475 = smul.u32 16, %s54
          %s476 = smul.addr %s475, 2
          %s477 = sadd.s32 %s474, %s476
          %s478 = smul.addr %s477, 4
          %s479 = scalar_lea.vmem %s2, %s478
          // Predicated region
          $region45: #{tpu_custom_call.1} parent=43 // pred_check
            _
          $region46: #{tpu_custom_call.1} parent=43 // pred_check_branch
            %481 = sbr.rel (0) target = $region48
          $region47: #{tpu_custom_call.1} parent=43 // pred_region
            // Predicated region
            $region49: #{tpu_custom_call.1} parent=47 // pred_check
              _
            $region50: #{tpu_custom_call.1} parent=47 // pred_check_branch
              %483 = sbr.rel target = $region52
            $region51: #{tpu_custom_call.1} parent=47 // pred_region
              // Predicated region
              $region64: #{tpu_custom_call.1} parent=51 // pred_check
                _
              $region65: #{tpu_custom_call.1} parent=51 // pred_check_branch
                %529 = sbr.rel (0) target = $region67
              $region66: #{tpu_custom_call.1} parent=51 // pred_region
                loop: start=0, step=1, limit=1
                $region68: #{tpu_custom_call.1} parent=66 // loop_pre_header
                  _
                $region69: #{tpu_custom_call.1} parent=66 // loop_header
                  %s531 = sphi 0, %s535
                  %p532 = scmp.ge.s32.totalorder %s531, 1
                  %s536 = sphi %s479, %s479
                  %s537 = sphi %s466, %s466
                $region70: #{tpu_custom_call.1} parent=66 // loop_header_branch
                  %534 = sbr.rel (%p532) target = $region74
                $region71: #{tpu_custom_call.1} parent=66 // loop_body
                  _
                $region72: #{tpu_custom_call.1} parent=66 // loop_footer
                  %s535 = sadd.s32 1, %s531
                $region73: #{tpu_custom_call.1} parent=66 // loop_footer_branch
                  %530 = sbr.rel target = $region69
                $region74: #{tpu_custom_call.1} parent=66 // loop_exit
                  _
                %s539 = ssub.s32 16, 1
                loop: start=0, step=1, limit=1
                $region75: #{tpu_custom_call.1} parent=66 // loop_pre_header
                  _
                $region76: #{tpu_custom_call.1} parent=66 // loop_header
                  %s541 = sphi 0, %s545
                  %p542 = scmp.ge.s32.totalorder %s541, 1
                  %s546 = sphi %s479, %s479
                  %s547 = sphi %s466, %s466
                $region77: #{tpu_custom_call.1} parent=66 // loop_header_branch
                  %544 = sbr.rel (%p542) target = $region81
                $region78: #{tpu_custom_call.1} parent=66 // loop_body
                  %v548 = vld [vmem:[%s546] sm:%s539]
                  %549 = vst [vmem:[%s547] sm:%s539] %v548
                  %v550 = vld [vmem:[%s546 + $0x8] sm:%s539]
                  %551 = vst [vmem:[%s547 + $0x4] sm:%s539] %v550
                  %v552 = vld [vmem:[%s546 + $0x10] sm:%s539]
                  %553 = vst [vmem:[%s547 + $0x8] sm:%s539] %v552
                  %v554 = vld [vmem:[%s546 + $0x18] sm:%s539]
                  %555 = vst [vmem:[%s547 + $0xc] sm:%s539] %v554
                  %v556 = vld [vmem:[%s546 + $0x20] sm:%s539]
                  %557 = vst [vmem:[%s547 + $0x10] sm:%s539] %v556
                  %v558 = vld [vmem:[%s546 + $0x28] sm:%s539]
                  %559 = vst [vmem:[%s547 + $0x14] sm:%s539] %v558
                  %v560 = vld [vmem:[%s546 + $0x30] sm:%s539]
                  %561 = vst [vmem:[%s547 + $0x18] sm:%s539] %v560
                  %v562 = vld [vmem:[%s546 + $0x38] sm:%s539]
                  %563 = vst [vmem:[%s547 + $0x1c] sm:%s539] %v562
                  %v564 = vld [vmem:[%s546 + $0x40] sm:%s539]
                  %565 = vst [vmem:[%s547 + $0x20] sm:%s539] %v564
                  %v566 = vld [vmem:[%s546 + $0x48] sm:%s539]
                  %567 = vst [vmem:[%s547 + $0x24] sm:%s539] %v566
                  %v568 = vld [vmem:[%s546 + $0x50] sm:%s539]
                  %569 = vst [vmem:[%s547 + $0x28] sm:%s539] %v568
                  %v570 = vld [vmem:[%s546 + $0x58] sm:%s539]
                  %571 = vst [vmem:[%s547 + $0x2c] sm:%s539] %v570
                  %v572 = vld [vmem:[%s546 + $0x60] sm:%s539]
                  %573 = vst [vmem:[%s547 + $0x30] sm:%s539] %v572
                  %v574 = vld [vmem:[%s546 + $0x68] sm:%s539]
                  %575 = vst [vmem:[%s547 + $0x34] sm:%s539] %v574
                  %v576 = vld [vmem:[%s546 + $0x70] sm:%s539]
                  %577 = vst [vmem:[%s547 + $0x38] sm:%s539] %v576
                  %v578 = vld [vmem:[%s546 + $0x78] sm:%s539]
                  %579 = vst [vmem:[%s547 + $0x3c] sm:%s539] %v578
                $region79: #{tpu_custom_call.1} parent=66 // loop_footer
                  %s545 = sadd.s32 1, %s541
                $region80: #{tpu_custom_call.1} parent=66 // loop_footer_branch
                  %540 = sbr.rel target = $region76
                $region81: #{tpu_custom_call.1} parent=66 // loop_exit
                  _
              $region67: #{tpu_custom_call.1} parent=51 // pred_fallthru
                _
            $region52: #{tpu_custom_call.1} parent=47 // pred_fallthru
              _
            // Predicated region
            $region53: #{tpu_custom_call.1} parent=47 // pred_check
              _
            $region54: #{tpu_custom_call.1} parent=47 // pred_check_branch
              %485 = sbr.rel (0) target = $region56
            $region55: #{tpu_custom_call.1} parent=47 // pred_region
              %s487 = ssub.s32 16, 1
              loop: start=0, step=1, limit=1
              $region57: #{tpu_custom_call.1} parent=55 // loop_pre_header
                _
              $region58: #{tpu_custom_call.1} parent=55 // loop_header
                %s489 = sphi 0, %s493
                %p490 = scmp.ge.s32.totalorder %s489, 1
                %s494 = sphi %s479, %s479
                %s495 = sphi %s466, %s466
              $region59: #{tpu_custom_call.1} parent=55 // loop_header_branch
                %492 = sbr.rel (%p490) target = $region63
              $region60: #{tpu_custom_call.1} parent=55 // loop_body
                %v496 = vld [vmem:[%s494] sm:%s487]
                %497 = vst [vmem:[%s495] sm:%s487] %v496
                %v498 = vld [vmem:[%s494 + $0x8] sm:%s487]
                %499 = vst [vmem:[%s495 + $0x4] sm:%s487] %v498
                %v500 = vld [vmem:[%s494 + $0x10] sm:%s487]
                %501 = vst [vmem:[%s495 + $0x8] sm:%s487] %v500
                %v502 = vld [vmem:[%s494 + $0x18] sm:%s487]
                %503 = vst [vmem:[%s495 + $0xc] sm:%s487] %v502
                %v504 = vld [vmem:[%s494 + $0x20] sm:%s487]
                %505 = vst [vmem:[%s495 + $0x10] sm:%s487] %v504
                %v506 = vld [vmem:[%s494 + $0x28] sm:%s487]
                %507 = vst [vmem:[%s495 + $0x14] sm:%s487] %v506
                %v508 = vld [vmem:[%s494 + $0x30] sm:%s487]
                %509 = vst [vmem:[%s495 + $0x18] sm:%s487] %v508
                %v510 = vld [vmem:[%s494 + $0x38] sm:%s487]
                %511 = vst [vmem:[%s495 + $0x1c] sm:%s487] %v510
                %v512 = vld [vmem:[%s494 + $0x40] sm:%s487]
                %513 = vst [vmem:[%s495 + $0x20] sm:%s487] %v512
                %v514 = vld [vmem:[%s494 + $0x48] sm:%s487]
                %515 = vst [vmem:[%s495 + $0x24] sm:%s487] %v514
                %v516 = vld [vmem:[%s494 + $0x50] sm:%s487]
                %517 = vst [vmem:[%s495 + $0x28] sm:%s487] %v516
                %v518 = vld [vmem:[%s494 + $0x58] sm:%s487]
                %519 = vst [vmem:[%s495 + $0x2c] sm:%s487] %v518
                %v520 = vld [vmem:[%s494 + $0x60] sm:%s487]
                %521 = vst [vmem:[%s495 + $0x30] sm:%s487] %v520
                %v522 = vld [vmem:[%s494 + $0x68] sm:%s487]
                %523 = vst [vmem:[%s495 + $0x34] sm:%s487] %v522
                %v524 = vld [vmem:[%s494 + $0x70] sm:%s487]
                %525 = vst [vmem:[%s495 + $0x38] sm:%s487] %v524
                %v526 = vld [vmem:[%s494 + $0x78] sm:%s487]
                %527 = vst [vmem:[%s495 + $0x3c] sm:%s487] %v526
              $region61: #{tpu_custom_call.1} parent=55 // loop_footer
                %s493 = sadd.s32 1, %s489
              $region62: #{tpu_custom_call.1} parent=55 // loop_footer_branch
                %488 = sbr.rel target = $region58
              $region63: #{tpu_custom_call.1} parent=55 // loop_exit
                _
            $region56: #{tpu_custom_call.1} parent=47 // pred_fallthru
              _
          $region48: #{tpu_custom_call.1} parent=43 // pred_fallthru
            _
          %580 = vnop
        $region44: #{tpu_custom_call.1} parent=39 // pred_fallthru
          _
        // Predicated region
        $region82: #{tpu_custom_call.1} parent=39 // pred_check
          %p581 = pneg %p139
        $region83: #{tpu_custom_call.1} parent=39 // pred_check_branch
          %583 = sbr.rel (%p581) target = $region85
        $region84: #{tpu_custom_call.1} parent=39 // pred_region
          %s584 = sand.u32 %s129, 1
          %s585 = scalar_lea.sflag [#allocation8], %s584
          %s586 = sand.u32 %s129, 1
          %s587 = smul.addr %s586, 64
          %s588 = scalar_lea.vmem [#allocation7], %s587
          %s589 = sshra.s32 %s55, 7
          %s590 = sand.u32 %s55, 127
          %s591 = sadd.s32 %s589, %s54
          %s592 = smul.u32 %s591, 128
          %s593 = sshra.s32 %s55, 7
          %s594 = sand.u32 %s55, 127
          %s595 = sadd.s32 %s592, %s594
          %s596 = sld [smem:[#allocation4 + %s595]]
          %s597 = smul.u32 16, %s596
          %599 = vsyncadd %s585, 0
          %s600 = smul.addr %s597, 4
          %s601 = scalar_lea.hbm %s3, %s600
          %s602 = sshll.u32 %s601, 4
          %s603 = int_to_ptr.hbm [resolvable:$true] %s602
          %s604 = sshll.u32 %s588, 4
          %s605 = int_to_ptr.vmem [resolvable:$true] %s604
          %610 = dma.hbm_to_vmem [thread:$0]  %s603, 1024, %s605, %s585, 64, 64, 4
        $region85: #{tpu_custom_call.1} parent=39 // pred_fallthru
          _
        // Predicated region
        $region86: #{tpu_custom_call.1} parent=39 // pred_check
          %p611 = pneg %p165
        $region87: #{tpu_custom_call.1} parent=39 // pred_check_branch
          %613 = sbr.rel (%p611) target = $region89
        $region88: #{tpu_custom_call.1} parent=39 // pred_region
          %s614 = sand.u32 %s47, 1
          %s615 = scalar_lea.sflag [#allocation11], %s614
          %s616 = sand.u32 %s155, 1
          %s617 = smul.addr %s616, 64
          %s618 = scalar_lea.vmem [#allocation10], %s617
          %s619 = smul.u32 16, %s54
          %621 = vsyncadd %s615, 0
          %s622 = smul.addr %s619, 4
          %s623 = scalar_lea.hbm %s4, %s622
          %s624 = sshll.u32 %s623, 4
          %s625 = int_to_ptr.hbm [resolvable:$true] %s624
          %s626 = sshll.u32 %s618, 4
          %s627 = int_to_ptr.vmem [resolvable:$true] %s626
          %632 = dma.hbm_to_vmem [thread:$0]  %s625, 1024, %s627, %s615, 64, 64, 4
        $region89: #{tpu_custom_call.1} parent=39 // pred_fallthru
          _
        // Predicated region
        $region90: #{tpu_custom_call.1} parent=39 // pred_check
          %p633 = pneg %p191
        $region91: #{tpu_custom_call.1} parent=39 // pred_check_branch
          %635 = sbr.rel (%p633) target = $region93
        $region92: #{tpu_custom_call.1} parent=39 // pred_region
          %s636 = smul.u32 16, %s54
          %p637 = scmp.lt.s32.totalorder %s636, 31
          %s638 = scalar_select %p637, %s636, 31
          %s639 = smul.addr %s638, 8
          %s640 = scalar_lea.vmem %s5, %s639
          %s641 = smul.u32 16, %s54
        $region93: #{tpu_custom_call.1} parent=39 // pred_fallthru
          _
      $region40: #{tpu_custom_call.1} parent=5 // pred_fallthru
        _
      %p642 = scmp.le.s32.totalorder 1, %s47
      %p643 = scmp.lt.s32.totalorder %s47, 5
      %p644 = pnand %p642, %p643
      %p645 = pneg %p644
      // Predicated region
      $region94: #{tpu_custom_call.1} parent=5 // pred_check
        _
      $region95: #{tpu_custom_call.1} parent=5 // pred_check_branch
        %647 = sbr.rel (%p644) target = $region97
      $region96: #{tpu_custom_call.1} parent=5 // pred_region
        %s648 = ssub.s32 %s47, 1
        %s649 = sand.u32 %s90, 1
        %s650 = sand.u32 %s90, 1
        %s651 = smul.addr %s650, 64
        %s652 = scalar_lea.vmem [#allocation6], %s651
        // Predicated region
        $region98: #{tpu_custom_call.1} parent=96 // pred_check
          %p653 = pneg %p103
        $region99: #{tpu_custom_call.1} parent=96 // pred_check_branch
          %655 = sbr.rel (%p653) target = $region101
        $region100: #{tpu_custom_call.1} parent=96 // pred_region
          _
        $region101: #{tpu_custom_call.1} parent=96 // pred_fallthru
          _
        %s656 = sand.u32 %s132, 1
        %s657 = scalar_lea.sflag [#allocation8], %s656
        %s658 = sand.u32 %s132, 1
        %s659 = smul.addr %s658, 64
        %s660 = scalar_lea.vmem [#allocation7], %s659
        // Predicated region
        $region102: #{tpu_custom_call.1} parent=96 // pred_check
          %p661 = pneg %p145
        $region103: #{tpu_custom_call.1} parent=96 // pred_check_branch
          %663 = sbr.rel (%p661) target = $region105
        $region104: #{tpu_custom_call.1} parent=96 // pred_region
          %665 = dma.done %s657, 1024
        $region105: #{tpu_custom_call.1} parent=96 // pred_fallthru
          _
        %s666 = sand.u32 %s52, 1
        %s667 = scalar_lea.sflag [#allocation11], %s666
        %s668 = sand.u32 %s158, 1
        %s669 = smul.addr %s668, 64
        %s670 = scalar_lea.vmem [#allocation10], %s669
        // Predicated region
        $region106: #{tpu_custom_call.1} parent=96 // pred_check
          %p671 = pneg %p171
        $region107: #{tpu_custom_call.1} parent=96 // pred_check_branch
          %673 = sbr.rel (%p671) target = $region109
        $region108: #{tpu_custom_call.1} parent=96 // pred_region
          %675 = dma.done %s667, 1024
        $region109: #{tpu_custom_call.1} parent=96 // pred_fallthru
          _
        // Predicated region
        $region110: #{tpu_custom_call.1} parent=96 // pred_check
          %p676 = pneg %p260
        $region111: #{tpu_custom_call.1} parent=96 // pred_check_branch
          %678 = sbr.rel (%p676) target = $region113
        $region112: #{tpu_custom_call.1} parent=96 // pred_region
          %680 = dma.done [#allocation11], 1024
        $region113: #{tpu_custom_call.1} parent=96 // pred_fallthru
          _
        // Predicated region
        $region114: #{tpu_custom_call.1} parent=96 // pred_check
          %p681 = pneg %p302
        $region115: #{tpu_custom_call.1} parent=96 // pred_check_branch
          %683 = sbr.rel (%p681) target = $region117
        $region116: #{tpu_custom_call.1} parent=96 // pred_region
          %685 = dma.done [#allocation14], 1024
        $region117: #{tpu_custom_call.1} parent=96 // pred_fallthru
          _
        %s686 = sand.u32 %s90, 1
        %s687 = sand.u32 %s90, 1
        %s688 = smul.addr %s687, 64
        %s689 = scalar_lea.vmem [#allocation6], %s688
        %p690 = pneg %p103
        %p691 = pneg %p100
        %s692 = sand.u32 %s132, 1
        %s693 = scalar_lea.sflag [#allocation8], %s692
        %s694 = sand.u32 %s132, 1
        %s695 = smul.addr %s694, 64
        %s696 = scalar_lea.vmem [#allocation7], %s695
        %p697 = pneg %p145
        %p698 = pneg %p142
        %s699 = sand.u32 %s52, 1
        %s700 = scalar_lea.sflag [#allocation11], %s699
        %s701 = sand.u32 %s158, 1
        %s702 = smul.addr %s701, 64
        %s703 = scalar_lea.vmem [#allocation10], %s702
        %p704 = pneg %p171
        %p705 = pneg %p168
        %s706 = smul.u32 16, %s56
        %p707 = scmp.lt.s32.totalorder %s706, 31
        %s708 = scalar_select %p707, %s706, 31
        %s709 = smul.addr %s708, 8
        %s710 = scalar_lea.vmem %s5, %s709
        %p711 = pneg %p197
        %p712 = pneg %p194
        %p713 = pneg %p218
        %p714 = pneg %p215
        %p715 = pneg %p239
        %p716 = pneg %p236
        %p717 = pneg %p260
        %p718 = pneg %p257
        %p719 = pneg %p281
        %p720 = pneg %p278
        %p721 = pneg %p302
        %p722 = pneg %p299
        %p723 = pneg %p323
        %p724 = pneg %p320
        %p725 = pneg %p349
        %p726 = pneg %p346
        %s727 = sand.u32 %s336, 1
        %s728 = scalar_lea.sflag [#allocation9], %s727
        %s729 = sand.u32 %s336, 1
        %s730 = smul.addr %s729, 64
        %s731 = scalar_lea.vmem [#allocation15], %s730
        %p732 = pneg %p375
        %p733 = pneg %p372
        %s734 = sand.u32 %s52, 1
        %s735 = scalar_lea.sflag [#allocation17], %s734
        %s736 = sand.u32 %s362, 1
        %s737 = scalar_lea.vmem [#allocation16], %s736
        %p738 = pneg %p401
        %p739 = pneg %p398
        %s740 = sand.u32 %s52, 1
        %s741 = scalar_lea.sflag [#allocation17], %s740
        %s742 = sand.u32 %s388, 1
        %s743 = scalar_lea.vmem [#allocation18], %s742
        %s744 = sshra.s32 %s57, 7
        %s745 = sand.u32 %s57, 127
        %s746 = sadd.s32 %s744, %s56
        %s747 = smul.u32 %s746, 128
        %s748 = sshra.s32 %s57, 7
        %s749 = sand.u32 %s57, 127
        %s750 = sadd.s32 %s747, %s749
        %s751 = sld [smem:[#allocation4 + %s750]]
        %s752 = smul.u32 16, %s56
        %s753 = sshra.s32 %s57, 7
        %s754 = sand.u32 %s57, 127
        %s755 = sadd.s32 %s753, %s56
        %s756 = smul.u32 %s755, 128
        %s757 = sshra.s32 %s57, 7
        %s758 = sand.u32 %s57, 127
        %s759 = sadd.s32 %s756, %s758
        %s760 = sld [smem:[#allocation4 + %s759]]
        %s761 = smul.u32 16, %s760
        %s762 = smul.u32 16, %s56
        %s763 = smul.u32 16, %s56
        %p764 = scmp.lt.s32.totalorder %s763, 31
        %s765 = scalar_select %p764, %s763, 31
        %s766 = smul.addr %s765, 8
        %s767 = scalar_lea.vmem %s5, %s766
        %s768 = smul.u32 16, %s56
        %s769 = smul.u32 16, %s56
        %p770 = scmp.eq.s32.totalorder %s57, 0
        // Predicated region
        $region118: #{tpu_custom_call.1} parent=96 // pred_check
          %p771 = pneg %p770
        $region119: #{tpu_custom_call.1} parent=96 // pred_check_branch
          %773 = sbr.rel (%p771) target = $region121
        $region120: #{tpu_custom_call.1} parent=96 // pred_region
          %774 = vst [vmem:[#allocation2] sm:$0xff] 0.0
          %775 = vst [vmem:[#allocation2 + $0x8] sm:$0xff] 0.0
          %776 = vst [vmem:[#allocation2 + $0x10] sm:$0xff] 0.0
          %777 = vst [vmem:[#allocation2 + $0x18] sm:$0xff] 0.0
          %778 = vst [vmem:[#allocation2 + $0x20] sm:$0xff] 0.0
          %779 = vst [vmem:[#allocation2 + $0x28] sm:$0xff] 0.0
          %780 = vst [vmem:[#allocation2 + $0x30] sm:$0xff] 0.0
          %781 = vst [vmem:[#allocation2 + $0x38] sm:$0xff] 0.0
          %782 = vst [vmem:[#allocation2 + $0x40] sm:$0xff] 0.0
          %783 = vst [vmem:[#allocation2 + $0x48] sm:$0xff] 0.0
          %784 = vst [vmem:[#allocation2 + $0x50] sm:$0xff] 0.0
          %785 = vst [vmem:[#allocation2 + $0x58] sm:$0xff] 0.0
          %786 = vst [vmem:[#allocation2 + $0x60] sm:$0xff] 0.0
          %787 = vst [vmem:[#allocation2 + $0x68] sm:$0xff] 0.0
          %788 = vst [vmem:[#allocation2 + $0x70] sm:$0xff] 0.0
          %789 = vst [vmem:[#allocation2 + $0x78] sm:$0xff] 0.0
        $region121: #{tpu_custom_call.1} parent=96 // pred_fallthru
          _
        %s790 = sld [smem:[#allocation5 + %s56]]
        %p791 = scmp.lt.s32.totalorder %s57, %s790
        // Predicated region
        $region122: #{tpu_custom_call.1} parent=96 // pred_check
          %p792 = pneg %p791
        $region123: #{tpu_custom_call.1} parent=96 // pred_check_branch
          %794 = sbr.rel (%p792) target = $region125
        $region124: #{tpu_custom_call.1} parent=96 // pred_region
          %v795 = vld [vmem:[#allocation2] sm:$0xff]
          %v796 = vld [vmem:[#allocation2 + $0x8] sm:$0xff]
          %v797 = vld [vmem:[#allocation2 + $0x10] sm:$0xff]
          %v798 = vld [vmem:[#allocation2 + $0x18] sm:$0xff]
          %v799 = vld [vmem:[#allocation2 + $0x20] sm:$0xff]
          %v800 = vld [vmem:[#allocation2 + $0x28] sm:$0xff]
          %v801 = vld [vmem:[#allocation2 + $0x30] sm:$0xff]
          %v802 = vld [vmem:[#allocation2 + $0x38] sm:$0xff]
          %v803 = vld [vmem:[#allocation2 + $0x40] sm:$0xff]
          %v804 = vld [vmem:[#allocation2 + $0x48] sm:$0xff]
          %v805 = vld [vmem:[#allocation2 + $0x50] sm:$0xff]
          %v806 = vld [vmem:[#allocation2 + $0x58] sm:$0xff]
          %v807 = vld [vmem:[#allocation2 + $0x60] sm:$0xff]
          %v808 = vld [vmem:[#allocation2 + $0x68] sm:$0xff]
          %v809 = vld [vmem:[#allocation2 + $0x70] sm:$0xff]
          %v810 = vld [vmem:[#allocation2 + $0x78] sm:$0xff]
          %v811 = vld [vmem:[%s652] sm:$0xf]
          %v812 = vld [vmem:[%s652 + $0x4] sm:$0xf]
          %v813 = vld [vmem:[%s652 + $0x8] sm:$0xf]
          %v814 = vld [vmem:[%s652 + $0xc] sm:$0xf]
          %v815 = vld [vmem:[%s652 + $0x10] sm:$0xf]
          %v816 = vld [vmem:[%s652 + $0x14] sm:$0xf]
          %v817 = vld [vmem:[%s652 + $0x18] sm:$0xf]
          %v818 = vld [vmem:[%s652 + $0x1c] sm:$0xf]
          %v819 = vld [vmem:[%s652 + $0x20] sm:$0xf]
          %v820 = vld [vmem:[%s652 + $0x24] sm:$0xf]
          %v821 = vld [vmem:[%s652 + $0x28] sm:$0xf]
          %v822 = vld [vmem:[%s652 + $0x2c] sm:$0xf]
          %v823 = vld [vmem:[%s652 + $0x30] sm:$0xf]
          %v824 = vld [vmem:[%s652 + $0x34] sm:$0xf]
          %v825 = vld [vmem:[%s652 + $0x38] sm:$0xf]
          %v826 = vld [vmem:[%s652 + $0x3c] sm:$0xf]
          %v827 = vld [vmem:[%s660] sm:$0xf]
          %v828 = vld [vmem:[%s660 + $0x4] sm:$0xf]
          %v829 = vld [vmem:[%s660 + $0x8] sm:$0xf]
          %v830 = vld [vmem:[%s660 + $0xc] sm:$0xf]
          %v831 = vld [vmem:[%s660 + $0x10] sm:$0xf]
          %v832 = vld [vmem:[%s660 + $0x14] sm:$0xf]
          %v833 = vld [vmem:[%s660 + $0x18] sm:$0xf]
          %v834 = vld [vmem:[%s660 + $0x1c] sm:$0xf]
          %v835 = vld [vmem:[%s660 + $0x20] sm:$0xf]
          %v836 = vld [vmem:[%s660 + $0x24] sm:$0xf]
          %v837 = vld [vmem:[%s660 + $0x28] sm:$0xf]
          %v838 = vld [vmem:[%s660 + $0x2c] sm:$0xf]
          %v839 = vld [vmem:[%s660 + $0x30] sm:$0xf]
          %v840 = vld [vmem:[%s660 + $0x34] sm:$0xf]
          %v841 = vld [vmem:[%s660 + $0x38] sm:$0xf]
          %v842 = vld [vmem:[%s660 + $0x3c] sm:$0xf]
          %v859 = vunpack.c.l.b16 %v811
          %v860 = vunpack.c.l.b16 %v812
          %v861 = vunpack.c.l.b16 %v813
          %v862 = vunpack.c.l.b16 %v814
          %v863 = vunpack.c.l.b16 %v815
          %v864 = vunpack.c.l.b16 %v816
          %v865 = vunpack.c.l.b16 %v817
          %v866 = vunpack.c.l.b16 %v818
          %v867 = vunpack.c.l.b16 %v819
          %v868 = vunpack.c.l.b16 %v820
          %v869 = vunpack.c.l.b16 %v821
          %v870 = vunpack.c.l.b16 %v822
          %v871 = vunpack.c.l.b16 %v823
          %v872 = vunpack.c.l.b16 %v824
          %v873 = vunpack.c.l.b16 %v825
          %v874 = vunpack.c.l.b16 %v826
          %v875 = vpack.c.b16 %v860, %v859
          %v876 = vpack.c.b16 %v862, %v861
          %v877 = vpack.c.b16 %v864, %v863
          %v878 = vpack.c.b16 %v866, %v865
          %v879 = vpack.c.b16 %v868, %v867
          %v880 = vpack.c.b16 %v870, %v869
          %v881 = vpack.c.b16 %v872, %v871
          %v882 = vpack.c.b16 %v874, %v873
          %v907 = vunpack.c.l.b16 %v827
          %v908 = vunpack.c.l.b16 %v828
          %v909 = vunpack.c.l.b16 %v829
          %v910 = vunpack.c.l.b16 %v830
          %v911 = vunpack.c.l.b16 %v831
          %v912 = vunpack.c.l.b16 %v832
          %v913 = vunpack.c.l.b16 %v833
          %v914 = vunpack.c.l.b16 %v834
          %v915 = vunpack.c.l.b16 %v835
          %v916 = vunpack.c.l.b16 %v836
          %v917 = vunpack.c.l.b16 %v837
          %v918 = vunpack.c.l.b16 %v838
          %v919 = vunpack.c.l.b16 %v839
          %v920 = vunpack.c.l.b16 %v840
          %v921 = vunpack.c.l.b16 %v841
          %v922 = vunpack.c.l.b16 %v842
          %v923 = vpack.c.b16 %v908, %v907
          %v924 = vpack.c.b16 %v910, %v909
          %v925 = vpack.c.b16 %v912, %v911
          %v926 = vpack.c.b16 %v914, %v913
          %v927 = vpack.c.b16 %v916, %v915
          %v928 = vpack.c.b16 %v918, %v917
          %v929 = vpack.c.b16 %v920, %v919
          %v930 = vpack.c.b16 %v922, %v921
          %939 = vmatpush.bf16.msra.mxu0 %v930
          %940 = vmatpush.bf16.msra.mxu0 %v929
          %941 = vmatpush.bf16.msra.mxu0 %v928
          %942 = vmatpush.bf16.msra.mxu0 %v927
          %943 = vmatpush.bf16.msra.mxu0 %v926
          %944 = vmatpush.bf16.msra.mxu0 %v925
          %945 = vmatpush.bf16.msra.mxu0 %v924
          %946 = vmatpush.bf16.msra.mxu0 %v923
          %947 = vmatmul.bf16.gmra.mxu0 %v875
          %v948 = vpop.f32.mrf.mxu0
          %v949 = vadd.f32 0.0, %v948
          %v950 = vpop.f32.mrf.mxu0
          %v951 = vadd.f32 0.0, %v950
          %952 = vmatmul.bf16.gmra.mxu0 %v876
          %v953 = vpop.f32.mrf.mxu0
          %v954 = vadd.f32 0.0, %v953
          %v955 = vpop.f32.mrf.mxu0
          %v956 = vadd.f32 0.0, %v955
          %957 = vmatmul.bf16.gmra.mxu0 %v877
          %v958 = vpop.f32.mrf.mxu0
          %v959 = vadd.f32 0.0, %v958
          %v960 = vpop.f32.mrf.mxu0
          %v961 = vadd.f32 0.0, %v960
          %962 = vmatmul.bf16.gmra.mxu0 %v878
          %v963 = vpop.f32.mrf.mxu0
          %v964 = vadd.f32 0.0, %v963
          %v965 = vpop.f32.mrf.mxu0
          %v966 = vadd.f32 0.0, %v965
          %967 = vmatmul.bf16.gmra.mxu0 %v879
          %v968 = vpop.f32.mrf.mxu0
          %v969 = vadd.f32 0.0, %v968
          %v970 = vpop.f32.mrf.mxu0
          %v971 = vadd.f32 0.0, %v970
          %972 = vmatmul.bf16.gmra.mxu0 %v880
          %v973 = vpop.f32.mrf.mxu0
          %v974 = vadd.f32 0.0, %v973
          %v975 = vpop.f32.mrf.mxu0
          %v976 = vadd.f32 0.0, %v975
          %977 = vmatmul.bf16.gmra.mxu0 %v881
          %v978 = vpop.f32.mrf.mxu0
          %v979 = vadd.f32 0.0, %v978
          %v980 = vpop.f32.mrf.mxu0
          %v981 = vadd.f32 0.0, %v980
          %982 = vmatmul.bf16.gmra.mxu0 %v882
          %v983 = vpop.f32.mrf.mxu0
          %v984 = vadd.f32 0.0, %v983
          %v985 = vpop.f32.mrf.mxu0
          %v986 = vadd.f32 0.0, %v985
          %987 = vdwg.mxu0
          %v988 = vadd.f32 %v795, %v949
          %v989 = vadd.f32 %v796, %v951
          %v990 = vadd.f32 %v797, %v954
          %v991 = vadd.f32 %v798, %v956
          %v992 = vadd.f32 %v799, %v959
          %v993 = vadd.f32 %v800, %v961
          %v994 = vadd.f32 %v801, %v964
          %v995 = vadd.f32 %v802, %v966
          %v996 = vadd.f32 %v803, %v969
          %v997 = vadd.f32 %v804, %v971
          %v998 = vadd.f32 %v805, %v974
          %v999 = vadd.f32 %v806, %v976
          %v1000 = vadd.f32 %v807, %v979
          %v1001 = vadd.f32 %v808, %v981
          %v1002 = vadd.f32 %v809, %v984
          %v1003 = vadd.f32 %v810, %v986
          %1004 = vst [vmem:[#allocation2] sm:$0xff] %v988
          %1005 = vst [vmem:[#allocation2 + $0x8] sm:$0xff] %v989
          %1006 = vst [vmem:[#allocation2 + $0x10] sm:$0xff] %v990
          %1007 = vst [vmem:[#allocation2 + $0x18] sm:$0xff] %v991
          %1008 = vst [vmem:[#allocation2 + $0x20] sm:$0xff] %v992
          %1009 = vst [vmem:[#allocation2 + $0x28] sm:$0xff] %v993
          %1010 = vst [vmem:[#allocation2 + $0x30] sm:$0xff] %v994
          %1011 = vst [vmem:[#allocation2 + $0x38] sm:$0xff] %v995
          %1012 = vst [vmem:[#allocation2 + $0x40] sm:$0xff] %v996
          %1013 = vst [vmem:[#allocation2 + $0x48] sm:$0xff] %v997
          %1014 = vst [vmem:[#allocation2 + $0x50] sm:$0xff] %v998
          %1015 = vst [vmem:[#allocation2 + $0x58] sm:$0xff] %v999
          %1016 = vst [vmem:[#allocation2 + $0x60] sm:$0xff] %v1000
          %1017 = vst [vmem:[#allocation2 + $0x68] sm:$0xff] %v1001
          %1018 = vst [vmem:[#allocation2 + $0x70] sm:$0xff] %v1002
          %1019 = vst [vmem:[#allocation2 + $0x78] sm:$0xff] %v1003
        $region125: #{tpu_custom_call.1} parent=96 // pred_fallthru
          _
        %p1020 = scmp.eq.s32.totalorder %s57, 1
        // Predicated region
        $region126: #{tpu_custom_call.1} parent=96 // pred_check
          %p1021 = pneg %p1020
        $region127: #{tpu_custom_call.1} parent=96 // pred_check_branch
          %1023 = sbr.rel (%p1021) target = $region129
        $region128: #{tpu_custom_call.1} parent=96 // pred_region
          %v1024 = vld [vmem:[%s6] sm:$0x1]
          %v1025 = vld [vmem:[%s7] sm:$0x1]
          %v1026 = vld [vmem:[%s767] sm:$0xff]
          %v1027 = vld [vmem:[%s767 + $0x8] sm:$0xff]
          %v1028 = vld [vmem:[%s767 + $0x10] sm:$0xff]
          %v1029 = vld [vmem:[%s767 + $0x18] sm:$0xff]
          %v1030 = vld [vmem:[%s767 + $0x20] sm:$0xff]
          %v1031 = vld [vmem:[%s767 + $0x28] sm:$0xff]
          %v1032 = vld [vmem:[%s767 + $0x30] sm:$0xff]
          %v1033 = vld [vmem:[%s767 + $0x38] sm:$0xff]
          %v1034 = vld [vmem:[%s767 + $0x40] sm:$0xff]
          %v1035 = vld [vmem:[%s767 + $0x48] sm:$0xff]
          %v1036 = vld [vmem:[%s767 + $0x50] sm:$0xff]
          %v1037 = vld [vmem:[%s767 + $0x58] sm:$0xff]
          %v1038 = vld [vmem:[%s767 + $0x60] sm:$0xff]
          %v1039 = vld [vmem:[%s767 + $0x68] sm:$0xff]
          %v1040 = vld [vmem:[%s767 + $0x70] sm:$0xff]
          %v1041 = vld [vmem:[%s767 + $0x78] sm:$0xff]
          %v1042 = vld [vmem:[%s670] sm:$0xf]
          %v1043 = vld [vmem:[%s670 + $0x4] sm:$0xf]
          %v1044 = vld [vmem:[%s670 + $0x8] sm:$0xf]
          %v1045 = vld [vmem:[%s670 + $0xc] sm:$0xf]
          %v1046 = vld [vmem:[%s670 + $0x10] sm:$0xf]
          %v1047 = vld [vmem:[%s670 + $0x14] sm:$0xf]
          %v1048 = vld [vmem:[%s670 + $0x18] sm:$0xf]
          %v1049 = vld [vmem:[%s670 + $0x1c] sm:$0xf]
          %v1050 = vld [vmem:[%s670 + $0x20] sm:$0xf]
          %v1051 = vld [vmem:[%s670 + $0x24] sm:$0xf]
          %v1052 = vld [vmem:[%s670 + $0x28] sm:$0xf]
          %v1053 = vld [vmem:[%s670 + $0x2c] sm:$0xf]
          %v1054 = vld [vmem:[%s670 + $0x30] sm:$0xf]
          %v1055 = vld [vmem:[%s670 + $0x34] sm:$0xf]
          %v1056 = vld [vmem:[%s670 + $0x38] sm:$0xf]
          %v1057 = vld [vmem:[%s670 + $0x3c] sm:$0xf]
          %v1058 = vunpack.c.l.bf16 %v1042
          %v1059 = vunpack.c.l.bf16 %v1043
          %v1060 = vunpack.c.l.bf16 %v1044
          %v1061 = vunpack.c.l.bf16 %v1045
          %v1062 = vunpack.c.l.bf16 %v1046
          %v1063 = vunpack.c.l.bf16 %v1047
          %v1064 = vunpack.c.l.bf16 %v1048
          %v1065 = vunpack.c.l.bf16 %v1049
          %v1066 = vunpack.c.l.bf16 %v1050
          %v1067 = vunpack.c.l.bf16 %v1051
          %v1068 = vunpack.c.l.bf16 %v1052
          %v1069 = vunpack.c.l.bf16 %v1053
          %v1070 = vunpack.c.l.bf16 %v1054
          %v1071 = vunpack.c.l.bf16 %v1055
          %v1072 = vunpack.c.l.bf16 %v1056
          %v1073 = vunpack.c.l.bf16 %v1057
          %v1074 = vld [vmem:[#allocation2] sm:$0xff]
          %v1075 = vld [vmem:[#allocation2 + $0x8] sm:$0xff]
          %v1076 = vld [vmem:[#allocation2 + $0x10] sm:$0xff]
          %v1077 = vld [vmem:[#allocation2 + $0x18] sm:$0xff]
          %v1078 = vld [vmem:[#allocation2 + $0x20] sm:$0xff]
          %v1079 = vld [vmem:[#allocation2 + $0x28] sm:$0xff]
          %v1080 = vld [vmem:[#allocation2 + $0x30] sm:$0xff]
          %v1081 = vld [vmem:[#allocation2 + $0x38] sm:$0xff]
          %v1082 = vld [vmem:[#allocation2 + $0x40] sm:$0xff]
          %v1083 = vld [vmem:[#allocation2 + $0x48] sm:$0xff]
          %v1084 = vld [vmem:[#allocation2 + $0x50] sm:$0xff]
          %v1085 = vld [vmem:[#allocation2 + $0x58] sm:$0xff]
          %v1086 = vld [vmem:[#allocation2 + $0x60] sm:$0xff]
          %v1087 = vld [vmem:[#allocation2 + $0x68] sm:$0xff]
          %v1088 = vld [vmem:[#allocation2 + $0x70] sm:$0xff]
          %v1089 = vld [vmem:[#allocation2 + $0x78] sm:$0xff]
          %v1090 = vadd.f32 %v1074, %v1058
          %v1091 = vadd.f32 %v1075, %v1059
          %v1092 = vadd.f32 %v1076, %v1060
          %v1093 = vadd.f32 %v1077, %v1061
          %v1094 = vadd.f32 %v1078, %v1062
          %v1095 = vadd.f32 %v1079, %v1063
          %v1096 = vadd.f32 %v1080, %v1064
          %v1097 = vadd.f32 %v1081, %v1065
          %v1098 = vadd.f32 %v1082, %v1066
          %v1099 = vadd.f32 %v1083, %v1067
          %v1100 = vadd.f32 %v1084, %v1068
          %v1101 = vadd.f32 %v1085, %v1069
          %v1102 = vadd.f32 %v1086, %v1070
          %v1103 = vadd.f32 %v1087, %v1071
          %v1104 = vadd.f32 %v1088, %v1072
          %v1105 = vadd.f32 %v1089, %v1073
          %v1106 = vadd.f32 %v1026, 1.0
          %v1107 = vadd.f32 %v1027, 1.0
          %v1108 = vadd.f32 %v1028, 1.0
          %v1109 = vadd.f32 %v1029, 1.0
          %v1110 = vadd.f32 %v1030, 1.0
          %v1111 = vadd.f32 %v1031, 1.0
          %v1112 = vadd.f32 %v1032, 1.0
          %v1113 = vadd.f32 %v1033, 1.0
          %v1114 = vadd.f32 %v1034, 1.0
          %v1115 = vadd.f32 %v1035, 1.0
          %v1116 = vadd.f32 %v1036, 1.0
          %v1117 = vadd.f32 %v1037, 1.0
          %v1118 = vadd.f32 %v1038, 1.0
          %v1119 = vadd.f32 %v1039, 1.0
          %v1120 = vadd.f32 %v1040, 1.0
          %v1121 = vadd.f32 %v1041, 1.0
          %1123 = vset.pattern.permute.xlu0 0
          %1124 = vperm.xlu0 %1123, %v1106
          %v1125 = vpop.permute.xlu0 %1124
          %1128 = vset.pattern.permute.xlu0 0
          %1129 = vperm.xlu0 %1128, %v1107
          %v1130 = vpop.permute.xlu0 %1129
          %1133 = vset.pattern.permute.xlu0 0
          %1134 = vperm.xlu0 %1133, %v1108
          %v1135 = vpop.permute.xlu0 %1134
          %1138 = vset.pattern.permute.xlu0 0
          %1139 = vperm.xlu0 %1138, %v1109
          %v1140 = vpop.permute.xlu0 %1139
          %1143 = vset.pattern.permute.xlu0 0
          %1144 = vperm.xlu0 %1143, %v1110
          %v1145 = vpop.permute.xlu0 %1144
          %1148 = vset.pattern.permute.xlu0 0
          %1149 = vperm.xlu0 %1148, %v1111
          %v1150 = vpop.permute.xlu0 %1149
          %1153 = vset.pattern.permute.xlu0 0
          %1154 = vperm.xlu0 %1153, %v1112
          %v1155 = vpop.permute.xlu0 %1154
          %1158 = vset.pattern.permute.xlu0 0
          %1159 = vperm.xlu0 %1158, %v1113
          %v1160 = vpop.permute.xlu0 %1159
          %1163 = vset.pattern.permute.xlu0 0
          %1164 = vperm.xlu0 %1163, %v1114
          %v1165 = vpop.permute.xlu0 %1164
          %1168 = vset.pattern.permute.xlu0 0
          %1169 = vperm.xlu0 %1168, %v1115
          %v1170 = vpop.permute.xlu0 %1169
          %1173 = vset.pattern.permute.xlu0 0
          %1174 = vperm.xlu0 %1173, %v1116
          %v1175 = vpop.permute.xlu0 %1174
          %1178 = vset.pattern.permute.xlu0 0
          %1179 = vperm.xlu0 %1178, %v1117
          %v1180 = vpop.permute.xlu0 %1179
          %1183 = vset.pattern.permute.xlu0 0
          %1184 = vperm.xlu0 %1183, %v1118
          %v1185 = vpop.permute.xlu0 %1184
          %1188 = vset.pattern.permute.xlu0 0
          %1189 = vperm.xlu0 %1188, %v1119
          %v1190 = vpop.permute.xlu0 %1189
          %1193 = vset.pattern.permute.xlu0 0
          %1194 = vperm.xlu0 %1193, %v1120
          %v1195 = vpop.permute.xlu0 %1194
          %1198 = vset.pattern.permute.xlu0 0
          %1199 = vperm.xlu0 %1198, %v1121
          %v1200 = vpop.permute.xlu0 %1199
          %v1203 = vperm.slane %v1024, 0
          %v1205 = vmul.f32 %v1125, %v1203
          %v1206 = vmul.f32 %v1130, %v1203
          %v1207 = vmul.f32 %v1135, %v1203
          %v1208 = vmul.f32 %v1140, %v1203
          %v1209 = vmul.f32 %v1145, %v1203
          %v1210 = vmul.f32 %v1150, %v1203
          %v1211 = vmul.f32 %v1155, %v1203
          %v1212 = vmul.f32 %v1160, %v1203
          %v1213 = vmul.f32 %v1165, %v1203
          %v1214 = vmul.f32 %v1170, %v1203
          %v1215 = vmul.f32 %v1175, %v1203
          %v1216 = vmul.f32 %v1180, %v1203
          %v1217 = vmul.f32 %v1185, %v1203
          %v1218 = vmul.f32 %v1190, %v1203
          %v1219 = vmul.f32 %v1195, %v1203
          %v1220 = vmul.f32 %v1200, %v1203
          %v1221 = vsub.f32 %v1090, %v1205
          %v1222 = vsub.f32 %v1091, %v1206
          %v1223 = vsub.f32 %v1092, %v1207
          %v1224 = vsub.f32 %v1093, %v1208
          %v1225 = vsub.f32 %v1094, %v1209
          %v1226 = vsub.f32 %v1095, %v1210
          %v1227 = vsub.f32 %v1096, %v1211
          %v1228 = vsub.f32 %v1097, %v1212
          %v1229 = vsub.f32 %v1098, %v1213
          %v1230 = vsub.f32 %v1099, %v1214
          %v1231 = vsub.f32 %v1100, %v1215
          %v1232 = vsub.f32 %v1101, %v1216
          %v1233 = vsub.f32 %v1102, %v1217
          %v1234 = vsub.f32 %v1103, %v1218
          %v1235 = vsub.f32 %v1104, %v1219
          %v1236 = vsub.f32 %v1105, %v1220
          %v1238 = vperm.slane %v1025, 0
          %v1240 = vmul.f32 %v1221, %v1238
          %v1241 = vmul.f32 %v1222, %v1238
          %v1242 = vmul.f32 %v1223, %v1238
          %v1243 = vmul.f32 %v1224, %v1238
          %v1244 = vmul.f32 %v1225, %v1238
          %v1245 = vmul.f32 %v1226, %v1238
          %v1246 = vmul.f32 %v1227, %v1238
          %v1247 = vmul.f32 %v1228, %v1238
          %v1248 = vmul.f32 %v1229, %v1238
          %v1249 = vmul.f32 %v1230, %v1238
          %v1250 = vmul.f32 %v1231, %v1238
          %v1251 = vmul.f32 %v1232, %v1238
          %v1252 = vmul.f32 %v1233, %v1238
          %v1253 = vmul.f32 %v1234, %v1238
          %v1254 = vmul.f32 %v1235, %v1238
          %v1255 = vmul.f32 %v1236, %v1238
          %v1256 = vpack.c.bf16 %v1241, %v1240
          %v1257 = vpack.c.bf16 %v1243, %v1242
          %v1258 = vpack.c.bf16 %v1245, %v1244
          %v1259 = vpack.c.bf16 %v1247, %v1246
          %v1260 = vpack.c.bf16 %v1249, %v1248
          %v1261 = vpack.c.bf16 %v1251, %v1250
          %v1262 = vpack.c.bf16 %v1253, %v1252
          %v1263 = vpack.c.bf16 %v1255, %v1254
          %v1264 = vld [vmem:[#allocation12] sm:$0xf]
          %v1265 = vld [vmem:[#allocation12 + $0x4] sm:$0xf]
          %v1266 = vld [vmem:[#allocation12 + $0x8] sm:$0xf]
          %v1267 = vld [vmem:[#allocation12 + $0xc] sm:$0xf]
          %v1268 = vld [vmem:[#allocation12 + $0x10] sm:$0xf]
          %v1269 = vld [vmem:[#allocation12 + $0x14] sm:$0xf]
          %v1270 = vld [vmem:[#allocation12 + $0x18] sm:$0xf]
          %v1271 = vld [vmem:[#allocation12 + $0x1c] sm:$0xf]
          %v1272 = vld [vmem:[#allocation12 + $0x20] sm:$0xf]
          %v1273 = vld [vmem:[#allocation12 + $0x24] sm:$0xf]
          %v1274 = vld [vmem:[#allocation12 + $0x28] sm:$0xf]
          %v1275 = vld [vmem:[#allocation12 + $0x2c] sm:$0xf]
          %v1276 = vld [vmem:[#allocation12 + $0x30] sm:$0xf]
          %v1277 = vld [vmem:[#allocation12 + $0x34] sm:$0xf]
          %v1278 = vld [vmem:[#allocation12 + $0x38] sm:$0xf]
          %v1279 = vld [vmem:[#allocation12 + $0x3c] sm:$0xf]
          %v1280 = vld [vmem:[%s9] sm:$0x1]
          %v1282 = vperm.slane %v1280, 0
          %v1300 = vunpack.c.l.b16 %v1264
          %v1301 = vunpack.c.l.b16 %v1265
          %v1302 = vunpack.c.l.b16 %v1266
          %v1303 = vunpack.c.l.b16 %v1267
          %v1304 = vunpack.c.l.b16 %v1268
          %v1305 = vunpack.c.l.b16 %v1269
          %v1306 = vunpack.c.l.b16 %v1270
          %v1307 = vunpack.c.l.b16 %v1271
          %v1308 = vunpack.c.l.b16 %v1272
          %v1309 = vunpack.c.l.b16 %v1273
          %v1310 = vunpack.c.l.b16 %v1274
          %v1311 = vunpack.c.l.b16 %v1275
          %v1312 = vunpack.c.l.b16 %v1276
          %v1313 = vunpack.c.l.b16 %v1277
          %v1314 = vunpack.c.l.b16 %v1278
          %v1315 = vunpack.c.l.b16 %v1279
          %v1316 = vpack.c.b16 %v1301, %v1300
          %v1317 = vpack.c.b16 %v1303, %v1302
          %v1318 = vpack.c.b16 %v1305, %v1304
          %v1319 = vpack.c.b16 %v1307, %v1306
          %v1320 = vpack.c.b16 %v1309, %v1308
          %v1321 = vpack.c.b16 %v1311, %v1310
          %v1322 = vpack.c.b16 %v1313, %v1312
          %v1323 = vpack.c.b16 %v1315, %v1314
          %1332 = vmatpush.bf16.msra.mxu0 %v1323
          %1333 = vmatpush.bf16.msra.mxu0 %v1322
          %1334 = vmatpush.bf16.msra.mxu0 %v1321
          %1335 = vmatpush.bf16.msra.mxu0 %v1320
          %1336 = vmatpush.bf16.msra.mxu0 %v1319
          %1337 = vmatpush.bf16.msra.mxu0 %v1318
          %1338 = vmatpush.bf16.msra.mxu0 %v1317
          %1339 = vmatpush.bf16.msra.mxu0 %v1316
          %1340 = vmatmul.bf16.gmra.mxu0 %v1256
          %v1341 = vpop.f32.mrf.mxu0
          %v1342 = vadd.f32 %v1282, %v1341
          %v1343 = vpop.f32.mrf.mxu0
          %v1344 = vadd.f32 %v1282, %v1343
          %1345 = vmatmul.bf16.gmra.mxu0 %v1257
          %v1346 = vpop.f32.mrf.mxu0
          %v1347 = vadd.f32 %v1282, %v1346
          %v1348 = vpop.f32.mrf.mxu0
          %v1349 = vadd.f32 %v1282, %v1348
          %1350 = vmatmul.bf16.gmra.mxu0 %v1258
          %v1351 = vpop.f32.mrf.mxu0
          %v1352 = vadd.f32 %v1282, %v1351
          %v1353 = vpop.f32.mrf.mxu0
          %v1354 = vadd.f32 %v1282, %v1353
          %1355 = vmatmul.bf16.gmra.mxu0 %v1259
          %v1356 = vpop.f32.mrf.mxu0
          %v1357 = vadd.f32 %v1282, %v1356
          %v1358 = vpop.f32.mrf.mxu0
          %v1359 = vadd.f32 %v1282, %v1358
          %1360 = vmatmul.bf16.gmra.mxu0 %v1260
          %v1361 = vpop.f32.mrf.mxu0
          %v1362 = vadd.f32 %v1282, %v1361
          %v1363 = vpop.f32.mrf.mxu0
          %v1364 = vadd.f32 %v1282, %v1363
          %1365 = vmatmul.bf16.gmra.mxu0 %v1261
          %v1366 = vpop.f32.mrf.mxu0
          %v1367 = vadd.f32 %v1282, %v1366
          %v1368 = vpop.f32.mrf.mxu0
          %v1369 = vadd.f32 %v1282, %v1368
          %1370 = vmatmul.bf16.gmra.mxu0 %v1262
          %v1371 = vpop.f32.mrf.mxu0
          %v1372 = vadd.f32 %v1282, %v1371
          %v1373 = vpop.f32.mrf.mxu0
          %v1374 = vadd.f32 %v1282, %v1373
          %1375 = vmatmul.bf16.gmra.mxu0 %v1263
          %v1376 = vpop.f32.mrf.mxu0
          %v1377 = vadd.f32 %v1282, %v1376
          %v1378 = vpop.f32.mrf.mxu0
          %v1379 = vadd.f32 %v1282, %v1378
          %1380 = vdwg.mxu0
          %v1381 = vmax.f32 %v1342, 0.0
          %v1382 = vmax.f32 %v1344, 0.0
          %v1383 = vmax.f32 %v1347, 0.0
          %v1384 = vmax.f32 %v1349, 0.0
          %v1385 = vmax.f32 %v1352, 0.0
          %v1386 = vmax.f32 %v1354, 0.0
          %v1387 = vmax.f32 %v1357, 0.0
          %v1388 = vmax.f32 %v1359, 0.0
          %v1389 = vmax.f32 %v1362, 0.0
          %v1390 = vmax.f32 %v1364, 0.0
          %v1391 = vmax.f32 %v1367, 0.0
          %v1392 = vmax.f32 %v1369, 0.0
          %v1393 = vmax.f32 %v1372, 0.0
          %v1394 = vmax.f32 %v1374, 0.0
          %v1395 = vmax.f32 %v1377, 0.0
          %v1396 = vmax.f32 %v1379, 0.0
          %v1397 = vpack.c.bf16 %v1382, %v1381
          %v1398 = vpack.c.bf16 %v1384, %v1383
          %v1399 = vpack.c.bf16 %v1386, %v1385
          %v1400 = vpack.c.bf16 %v1388, %v1387
          %v1401 = vpack.c.bf16 %v1390, %v1389
          %v1402 = vpack.c.bf16 %v1392, %v1391
          %v1403 = vpack.c.bf16 %v1394, %v1393
          %v1404 = vpack.c.bf16 %v1396, %v1395
          %v1405 = vld [vmem:[#allocation13] sm:$0xf]
          %v1406 = vld [vmem:[#allocation13 + $0x4] sm:$0xf]
          %v1407 = vld [vmem:[#allocation13 + $0x8] sm:$0xf]
          %v1408 = vld [vmem:[#allocation13 + $0xc] sm:$0xf]
          %v1409 = vld [vmem:[#allocation13 + $0x10] sm:$0xf]
          %v1410 = vld [vmem:[#allocation13 + $0x14] sm:$0xf]
          %v1411 = vld [vmem:[#allocation13 + $0x18] sm:$0xf]
          %v1412 = vld [vmem:[#allocation13 + $0x1c] sm:$0xf]
          %v1413 = vld [vmem:[#allocation13 + $0x20] sm:$0xf]
          %v1414 = vld [vmem:[#allocation13 + $0x24] sm:$0xf]
          %v1415 = vld [vmem:[#allocation13 + $0x28] sm:$0xf]
          %v1416 = vld [vmem:[#allocation13 + $0x2c] sm:$0xf]
          %v1417 = vld [vmem:[#allocation13 + $0x30] sm:$0xf]
          %v1418 = vld [vmem:[#allocation13 + $0x34] sm:$0xf]
          %v1419 = vld [vmem:[#allocation13 + $0x38] sm:$0xf]
          %v1420 = vld [vmem:[#allocation13 + $0x3c] sm:$0xf]
          %v1421 = vld [vmem:[%s11] sm:$0x1]
          %v1423 = vperm.slane %v1421, 0
          %v1441 = vunpack.c.l.b16 %v1405
          %v1442 = vunpack.c.l.b16 %v1406
          %v1443 = vunpack.c.l.b16 %v1407
          %v1444 = vunpack.c.l.b16 %v1408
          %v1445 = vunpack.c.l.b16 %v1409
          %v1446 = vunpack.c.l.b16 %v1410
          %v1447 = vunpack.c.l.b16 %v1411
          %v1448 = vunpack.c.l.b16 %v1412
          %v1449 = vunpack.c.l.b16 %v1413
          %v1450 = vunpack.c.l.b16 %v1414
          %v1451 = vunpack.c.l.b16 %v1415
          %v1452 = vunpack.c.l.b16 %v1416
          %v1453 = vunpack.c.l.b16 %v1417
          %v1454 = vunpack.c.l.b16 %v1418
          %v1455 = vunpack.c.l.b16 %v1419
          %v1456 = vunpack.c.l.b16 %v1420
          %v1457 = vpack.c.b16 %v1442, %v1441
          %v1458 = vpack.c.b16 %v1444, %v1443
          %v1459 = vpack.c.b16 %v1446, %v1445
          %v1460 = vpack.c.b16 %v1448, %v1447
          %v1461 = vpack.c.b16 %v1450, %v1449
          %v1462 = vpack.c.b16 %v1452, %v1451
          %v1463 = vpack.c.b16 %v1454, %v1453
          %v1464 = vpack.c.b16 %v1456, %v1455
          %1473 = vmatpush.bf16.msra.mxu0 %v1464
          %1474 = vmatpush.bf16.msra.mxu0 %v1463
          %1475 = vmatpush.bf16.msra.mxu0 %v1462
          %1476 = vmatpush.bf16.msra.mxu0 %v1461
          %1477 = vmatpush.bf16.msra.mxu0 %v1460
          %1478 = vmatpush.bf16.msra.mxu0 %v1459
          %1479 = vmatpush.bf16.msra.mxu0 %v1458
          %1480 = vmatpush.bf16.msra.mxu0 %v1457
          %1481 = vmatmul.bf16.gmra.mxu0 %v1397
          %v1482 = vpop.f32.mrf.mxu0
          %v1483 = vadd.f32 %v1423, %v1482
          %v1484 = vpop.f32.mrf.mxu0
          %v1485 = vadd.f32 %v1423, %v1484
          %1486 = vmatmul.bf16.gmra.mxu0 %v1398
          %v1487 = vpop.f32.mrf.mxu0
          %v1488 = vadd.f32 %v1423, %v1487
          %v1489 = vpop.f32.mrf.mxu0
          %v1490 = vadd.f32 %v1423, %v1489
          %1491 = vmatmul.bf16.gmra.mxu0 %v1399
          %v1492 = vpop.f32.mrf.mxu0
          %v1493 = vadd.f32 %v1423, %v1492
          %v1494 = vpop.f32.mrf.mxu0
          %v1495 = vadd.f32 %v1423, %v1494
          %1496 = vmatmul.bf16.gmra.mxu0 %v1400
          %v1497 = vpop.f32.mrf.mxu0
          %v1498 = vadd.f32 %v1423, %v1497
          %v1499 = vpop.f32.mrf.mxu0
          %v1500 = vadd.f32 %v1423, %v1499
          %1501 = vmatmul.bf16.gmra.mxu0 %v1401
          %v1502 = vpop.f32.mrf.mxu0
          %v1503 = vadd.f32 %v1423, %v1502
          %v1504 = vpop.f32.mrf.mxu0
          %v1505 = vadd.f32 %v1423, %v1504
          %1506 = vmatmul.bf16.gmra.mxu0 %v1402
          %v1507 = vpop.f32.mrf.mxu0
          %v1508 = vadd.f32 %v1423, %v1507
          %v1509 = vpop.f32.mrf.mxu0
          %v1510 = vadd.f32 %v1423, %v1509
          %1511 = vmatmul.bf16.gmra.mxu0 %v1403
          %v1512 = vpop.f32.mrf.mxu0
          %v1513 = vadd.f32 %v1423, %v1512
          %v1514 = vpop.f32.mrf.mxu0
          %v1515 = vadd.f32 %v1423, %v1514
          %1516 = vmatmul.bf16.gmra.mxu0 %v1404
          %v1517 = vpop.f32.mrf.mxu0
          %v1518 = vadd.f32 %v1423, %v1517
          %v1519 = vpop.f32.mrf.mxu0
          %v1520 = vadd.f32 %v1423, %v1519
          %1521 = vdwg.mxu0
          %v1522 = vmax.f32 %v1483, 0.0
          %v1523 = vmax.f32 %v1485, 0.0
          %v1524 = vmax.f32 %v1488, 0.0
          %v1525 = vmax.f32 %v1490, 0.0
          %v1526 = vmax.f32 %v1493, 0.0
          %v1527 = vmax.f32 %v1495, 0.0
          %v1528 = vmax.f32 %v1498, 0.0
          %v1529 = vmax.f32 %v1500, 0.0
          %v1530 = vmax.f32 %v1503, 0.0
          %v1531 = vmax.f32 %v1505, 0.0
          %v1532 = vmax.f32 %v1508, 0.0
          %v1533 = vmax.f32 %v1510, 0.0
          %v1534 = vmax.f32 %v1513, 0.0
          %v1535 = vmax.f32 %v1515, 0.0
          %v1536 = vmax.f32 %v1518, 0.0
          %v1537 = vmax.f32 %v1520, 0.0
          %v1538 = vpack.c.bf16 %v1522, %v1522
          %v1539 = vpack.c.bf16 %v1523, %v1523
          %v1540 = vpack.c.bf16 %v1524, %v1524
          %v1541 = vpack.c.bf16 %v1525, %v1525
          %v1542 = vpack.c.bf16 %v1526, %v1526
          %v1543 = vpack.c.bf16 %v1527, %v1527
          %v1544 = vpack.c.bf16 %v1528, %v1528
          %v1545 = vpack.c.bf16 %v1529, %v1529
          %v1546 = vpack.c.bf16 %v1530, %v1530
          %v1547 = vpack.c.bf16 %v1531, %v1531
          %v1548 = vpack.c.bf16 %v1532, %v1532
          %v1549 = vpack.c.bf16 %v1533, %v1533
          %v1550 = vpack.c.bf16 %v1534, %v1534
          %v1551 = vpack.c.bf16 %v1535, %v1535
          %v1552 = vpack.c.bf16 %v1536, %v1536
          %v1553 = vpack.c.bf16 %v1537, %v1537
          %1554 = vst [vmem:[%s731] sm:$0xf] %v1538
          %1555 = vst [vmem:[%s731 + $0x4] sm:$0xf] %v1539
          %1556 = vst [vmem:[%s731 + $0x8] sm:$0xf] %v1540
          %1557 = vst [vmem:[%s731 + $0xc] sm:$0xf] %v1541
          %1558 = vst [vmem:[%s731 + $0x10] sm:$0xf] %v1542
          %1559 = vst [vmem:[%s731 + $0x14] sm:$0xf] %v1543
          %1560 = vst [vmem:[%s731 + $0x18] sm:$0xf] %v1544
          %1561 = vst [vmem:[%s731 + $0x1c] sm:$0xf] %v1545
          %1562 = vst [vmem:[%s731 + $0x20] sm:$0xf] %v1546
          %1563 = vst [vmem:[%s731 + $0x24] sm:$0xf] %v1547
          %1564 = vst [vmem:[%s731 + $0x28] sm:$0xf] %v1548
          %1565 = vst [vmem:[%s731 + $0x2c] sm:$0xf] %v1549
          %1566 = vst [vmem:[%s731 + $0x30] sm:$0xf] %v1550
          %1567 = vst [vmem:[%s731 + $0x34] sm:$0xf] %v1551
          %1568 = vst [vmem:[%s731 + $0x38] sm:$0xf] %v1552
          %1569 = vst [vmem:[%s731 + $0x3c] sm:$0xf] %v1553
          %v1570 = vlaneseq
          %v1571 = vshrl.u32 %v1570, 7
          %v1572 = vadd.s32 %v1571, 8
          %v1573 = vadd.s32 %v1571, 16
          %v1574 = vadd.s32 %v1571, 24
          %v1575 = vadd.s32 %v1571, 32
          %v1576 = vadd.s32 %v1571, 40
          %v1577 = vadd.s32 %v1571, 48
          %v1578 = vadd.s32 %v1571, 56
          %v1579 = vadd.s32 %v1571, 64
          %v1580 = vadd.s32 %v1571, 72
          %v1581 = vadd.s32 %v1571, 80
          %v1582 = vadd.s32 %v1571, 88
          %v1583 = vadd.s32 %v1571, 96
          %v1584 = vadd.s32 %v1571, 104
          %v1585 = vadd.s32 %v1571, 112
          %v1586 = vadd.s32 %v1571, 120
          %s1587 = smul.u32 %s56, 128
          %v1588 = vstv %s1587
          %v1589 = vadd.s32 %v1571, %v1588
          %v1590 = vadd.s32 %v1572, %v1588
          %v1591 = vadd.s32 %v1573, %v1588
          %v1592 = vadd.s32 %v1574, %v1588
          %v1593 = vadd.s32 %v1575, %v1588
          %v1594 = vadd.s32 %v1576, %v1588
          %v1595 = vadd.s32 %v1577, %v1588
          %v1596 = vadd.s32 %v1578, %v1588
          %v1597 = vadd.s32 %v1579, %v1588
          %v1598 = vadd.s32 %v1580, %v1588
          %v1599 = vadd.s32 %v1581, %v1588
          %v1600 = vadd.s32 %v1582, %v1588
          %v1601 = vadd.s32 %v1583, %v1588
          %v1602 = vadd.s32 %v1584, %v1588
          %v1603 = vadd.s32 %v1585, %v1588
          %v1604 = vadd.s32 %v1586, %v1588
          %vm1605 = vcmp.lt.s32.totalorder %v1589, 200
          %vm1606 = vcmp.lt.s32.totalorder %v1590, 200
          %vm1607 = vcmp.lt.s32.totalorder %v1591, 200
          %vm1608 = vcmp.lt.s32.totalorder %v1592, 200
          %vm1609 = vcmp.lt.s32.totalorder %v1593, 200
          %vm1610 = vcmp.lt.s32.totalorder %v1594, 200
          %vm1611 = vcmp.lt.s32.totalorder %v1595, 200
          %vm1612 = vcmp.lt.s32.totalorder %v1596, 200
          %vm1613 = vcmp.lt.s32.totalorder %v1597, 200
          %vm1614 = vcmp.lt.s32.totalorder %v1598, 200
          %vm1615 = vcmp.lt.s32.totalorder %v1599, 200
          %vm1616 = vcmp.lt.s32.totalorder %v1600, 200
          %vm1617 = vcmp.lt.s32.totalorder %v1601, 200
          %vm1618 = vcmp.lt.s32.totalorder %v1602, 200
          %vm1619 = vcmp.lt.s32.totalorder %v1603, 200
          %vm1620 = vcmp.lt.s32.totalorder %v1604, 200
          %v1621 = vsel %vm1605, 1, 0
          %v1622 = vsel %vm1606, 1, 0
          %v1623 = vsel %vm1607, 1, 0
          %v1624 = vsel %vm1608, 1, 0
          %v1625 = vsel %vm1609, 1, 0
          %v1626 = vsel %vm1610, 1, 0
          %v1627 = vsel %vm1611, 1, 0
          %v1628 = vsel %vm1612, 1, 0
          %v1629 = vsel %vm1613, 1, 0
          %v1630 = vsel %vm1614, 1, 0
          %v1631 = vsel %vm1615, 1, 0
          %v1632 = vsel %vm1616, 1, 0
          %v1633 = vsel %vm1617, 1, 0
          %v1634 = vsel %vm1618, 1, 0
          %v1635 = vsel %vm1619, 1, 0
          %v1636 = vsel %vm1620, 1, 0
          %v1637 = vcvt.s32.f32 %v1621
          %v1638 = vcvt.s32.f32 %v1622
          %v1639 = vcvt.s32.f32 %v1623
          %v1640 = vcvt.s32.f32 %v1624
          %v1641 = vcvt.s32.f32 %v1625
          %v1642 = vcvt.s32.f32 %v1626
          %v1643 = vcvt.s32.f32 %v1627
          %v1644 = vcvt.s32.f32 %v1628
          %v1645 = vcvt.s32.f32 %v1629
          %v1646 = vcvt.s32.f32 %v1630
          %v1647 = vcvt.s32.f32 %v1631
          %v1648 = vcvt.s32.f32 %v1632
          %v1649 = vcvt.s32.f32 %v1633
          %v1650 = vcvt.s32.f32 %v1634
          %v1651 = vcvt.s32.f32 %v1635
          %v1652 = vcvt.s32.f32 %v1636
          %v1653 = vmul.f32 %v1522, %v1637
          %v1654 = vmul.f32 %v1523, %v1638
          %v1655 = vmul.f32 %v1524, %v1639
          %v1656 = vmul.f32 %v1525, %v1640
          %v1657 = vmul.f32 %v1526, %v1641
          %v1658 = vmul.f32 %v1527, %v1642
          %v1659 = vmul.f32 %v1528, %v1643
          %v1660 = vmul.f32 %v1529, %v1644
          %v1661 = vmul.f32 %v1530, %v1645
          %v1662 = vmul.f32 %v1531, %v1646
          %v1663 = vmul.f32 %v1532, %v1647
          %v1664 = vmul.f32 %v1533, %v1648
          %v1665 = vmul.f32 %v1534, %v1649
          %v1666 = vmul.f32 %v1535, %v1650
          %v1667 = vmul.f32 %v1536, %v1651
          %v1668 = vmul.f32 %v1537, %v1652
          %v1669 = vadd.f32 %v1653, %v1654
          %v1670 = vadd.f32 %v1669, %v1655
          %v1671 = vadd.f32 %v1670, %v1656
          %v1672 = vadd.f32 %v1671, %v1657
          %v1673 = vadd.f32 %v1672, %v1658
          %v1674 = vadd.f32 %v1673, %v1659
          %v1675 = vadd.f32 %v1674, %v1660
          %v1676 = vadd.f32 %v1675, %v1661
          %v1677 = vadd.f32 %v1676, %v1662
          %v1678 = vadd.f32 %v1677, %v1663
          %v1679 = vadd.f32 %v1678, %v1664
          %v1680 = vadd.f32 %v1679, %v1665
          %v1681 = vadd.f32 %v1680, %v1666
          %v1682 = vadd.f32 %v1681, %v1667
          %v1683 = vadd.f32 %v1682, %v1668
          %v1684 = vrot.slane %v1683, 4
          %v1685 = vadd.f32 %v1683, %v1684
          %v1686 = vrot.slane %v1685, 2
          %v1687 = vadd.f32 %v1685, %v1686
          %v1688 = vrot.slane %v1687, 1
          %v1689 = vadd.f32 %v1687, %v1688
          %1690 = vst [vmem:[%s737] sm:$0x1] %v1689
          %v1691 = vmul.f32 %v1653, %v1653
          %v1692 = vmul.f32 %v1654, %v1654
          %v1693 = vmul.f32 %v1655, %v1655
          %v1694 = vmul.f32 %v1656, %v1656
          %v1695 = vmul.f32 %v1657, %v1657
          %v1696 = vmul.f32 %v1658, %v1658
          %v1697 = vmul.f32 %v1659, %v1659
          %v1698 = vmul.f32 %v1660, %v1660
          %v1699 = vmul.f32 %v1661, %v1661
          %v1700 = vmul.f32 %v1662, %v1662
          %v1701 = vmul.f32 %v1663, %v1663
          %v1702 = vmul.f32 %v1664, %v1664
          %v1703 = vmul.f32 %v1665, %v1665
          %v1704 = vmul.f32 %v1666, %v1666
          %v1705 = vmul.f32 %v1667, %v1667
          %v1706 = vmul.f32 %v1668, %v1668
          %v1707 = vadd.f32 %v1691, %v1692
          %v1708 = vadd.f32 %v1707, %v1693
          %v1709 = vadd.f32 %v1708, %v1694
          %v1710 = vadd.f32 %v1709, %v1695
          %v1711 = vadd.f32 %v1710, %v1696
          %v1712 = vadd.f32 %v1711, %v1697
          %v1713 = vadd.f32 %v1712, %v1698
          %v1714 = vadd.f32 %v1713, %v1699
          %v1715 = vadd.f32 %v1714, %v1700
          %v1716 = vadd.f32 %v1715, %v1701
          %v1717 = vadd.f32 %v1716, %v1702
          %v1718 = vadd.f32 %v1717, %v1703
          %v1719 = vadd.f32 %v1718, %v1704
          %v1720 = vadd.f32 %v1719, %v1705
          %v1721 = vadd.f32 %v1720, %v1706
          %v1722 = vrot.slane %v1721, 4
          %v1723 = vadd.f32 %v1721, %v1722
          %v1724 = vrot.slane %v1723, 2
          %v1725 = vadd.f32 %v1723, %v1724
          %v1726 = vrot.slane %v1725, 1
          %v1727 = vadd.f32 %v1725, %v1726
          %1728 = vst [vmem:[%s743] sm:$0x1] %v1727
        $region129: #{tpu_custom_call.1} parent=96 // pred_fallthru
          _
        %s1729 = sand.u32 %s336, 1
        %s1730 = scalar_lea.sflag [#allocation9], %s1729
        %s1731 = sand.u32 %s336, 1
        %s1732 = smul.addr %s1731, 64
        %s1733 = scalar_lea.vmem [#allocation15], %s1732
        %s1734 = sand.u32 %s52, 1
        %s1735 = scalar_lea.sflag [#allocation17], %s1734
        %s1736 = sand.u32 %s362, 1
        %s1737 = scalar_lea.vmem [#allocation16], %s1736
        %s1738 = sand.u32 %s52, 1
        %s1739 = scalar_lea.sflag [#allocation17], %s1738
        %s1740 = sand.u32 %s388, 1
        %s1741 = scalar_lea.vmem [#allocation18], %s1740
        // Predicated region
        $region130: #{tpu_custom_call.1} parent=96 // pred_check
          %p1742 = pneg %p346
        $region131: #{tpu_custom_call.1} parent=96 // pred_check_branch
          %1744 = sbr.rel (%p1742) target = $region133
        $region132: #{tpu_custom_call.1} parent=96 // pred_region
          %s1745 = smul.u32 16, %s56
          %1747 = vsyncadd %s1730, 0
          %s1748 = smul.addr %s1745, 4
          %s1749 = scalar_lea.hbm %s12, %s1748
          %s1750 = sshll.u32 %s1733, 4
          %s1751 = int_to_ptr.vmem [resolvable:$true] %s1750
          %s1752 = sshll.u32 %s1749, 4
          %s1753 = int_to_ptr.hbm [resolvable:$true] %s1752
          %1758 = dma.vmem_to_hbm [thread:$0]  %s1751, 1024, %s1753, %s1730, 64, 64, 4
        $region133: #{tpu_custom_call.1} parent=96 // pred_fallthru
          _
        // Predicated region
        $region134: #{tpu_custom_call.1} parent=96 // pred_check
          %p1759 = pneg %p372
        $region135: #{tpu_custom_call.1} parent=96 // pred_check_branch
          %1761 = sbr.rel (%p1759) target = $region137
        $region136: #{tpu_custom_call.1} parent=96 // pred_region
          %1763 = vsyncadd %s1735, 0
          %s1764 = scalar_lea.hbm %s13, %s56
          %s1766 = sshll.u32 %s1737, 4
          %s1767 = int_to_ptr.vmem [resolvable:$true] %s1766
          %s1768 = sshll.u32 %s1764, 4
          %s1769 = int_to_ptr.hbm [resolvable:$true] %s1768
          %1771 = dma.vmem_to_hbm [thread:$0]  %s1767, 16, %s1769, %s1735
        $region137: #{tpu_custom_call.1} parent=96 // pred_fallthru
          _
        // Predicated region
        $region138: #{tpu_custom_call.1} parent=96 // pred_check
          %p1772 = pneg %p398
        $region139: #{tpu_custom_call.1} parent=96 // pred_check_branch
          %1774 = sbr.rel (%p1772) target = $region141
        $region140: #{tpu_custom_call.1} parent=96 // pred_region
          %1776 = vsyncadd %s1739, 0
          %s1777 = scalar_lea.hbm %s14, %s56
          %s1779 = sshll.u32 %s1741, 4
          %s1780 = int_to_ptr.vmem [resolvable:$true] %s1779
          %s1781 = sshll.u32 %s1777, 4
          %s1782 = int_to_ptr.hbm [resolvable:$true] %s1781
          %1784 = dma.vmem_to_hbm [thread:$0]  %s1780, 16, %s1782, %s1739
        $region141: #{tpu_custom_call.1} parent=96 // pred_fallthru
          _
      $region97: #{tpu_custom_call.1} parent=5 // pred_fallthru
        _
      %p1785 = scmp.le.s32.totalorder 2, %s47
      // Predicated region
      $region142: #{tpu_custom_call.1} parent=5 // pred_check
        %p1786 = pneg %p1785
      $region143: #{tpu_custom_call.1} parent=5 // pred_check_branch
        %1788 = sbr.rel (%p1786) target = $region145
      $region144: #{tpu_custom_call.1} parent=5 // pred_region
        %s1789 = ssub.s32 %s47, 2
        // Predicated region
        $region146: #{tpu_custom_call.1} parent=144 // pred_check
          %p1790 = pneg %p352
        $region147: #{tpu_custom_call.1} parent=144 // pred_check_branch
          %1792 = sbr.rel (%p1790) target = $region149
        $region148: #{tpu_custom_call.1} parent=144 // pred_region
          %s1793 = sand.u32 %s337, 1
          %s1794 = scalar_lea.sflag [#allocation9], %s1793
          %s1795 = sand.u32 %s337, 1
          %s1796 = smul.addr %s1795, 64
          %s1797 = scalar_lea.vmem [#allocation15], %s1796
          %1799 = dma.done %s1794, 1024
        $region149: #{tpu_custom_call.1} parent=144 // pred_fallthru
          _
        // Predicated region
        $region150: #{tpu_custom_call.1} parent=144 // pred_check
          %p1800 = pneg %p378
        $region151: #{tpu_custom_call.1} parent=144 // pred_check_branch
          %1802 = sbr.rel (%p1800) target = $region153
        $region152: #{tpu_custom_call.1} parent=144 // pred_region
          %s1803 = sand.u32 %s53, 1
          %s1804 = scalar_lea.sflag [#allocation17], %s1803
          %s1805 = sand.u32 %s363, 1
          %s1806 = scalar_lea.vmem [#allocation16], %s1805
          %1808 = dma.done %s1804, 16
        $region153: #{tpu_custom_call.1} parent=144 // pred_fallthru
          _
        // Predicated region
        $region154: #{tpu_custom_call.1} parent=144 // pred_check
          %p1809 = pneg %p404
        $region155: #{tpu_custom_call.1} parent=144 // pred_check_branch
          %1811 = sbr.rel (%p1809) target = $region157
        $region156: #{tpu_custom_call.1} parent=144 // pred_region
          %s1812 = sand.u32 %s53, 1
          %s1813 = scalar_lea.sflag [#allocation17], %s1812
          %s1814 = sand.u32 %s389, 1
          %s1815 = scalar_lea.vmem [#allocation18], %s1814
          %1817 = dma.done %s1813, 16
        $region157: #{tpu_custom_call.1} parent=144 // pred_fallthru
          _
      $region145: #{tpu_custom_call.1} parent=5 // pred_fallthru
        _
    $region6: #{tpu_custom_call.1} parent=1 // loop_footer
      %s51 = sadd.s32 1, %s47
    $region7: #{tpu_custom_call.1} parent=1 // loop_footer_branch
      %46 = sbr.rel target = $region3
    $region8: #{tpu_custom_call.1} parent=1 // loop_exit
      _
    %1818 = vsyncpa [#allocation8], 1
    %s1819 = scalar_lea.sflag [#allocation8], 1
    %1820 = vsyncpa %s1819, 1
    %1821 = vsyncpa [#allocation11], 1
    %s1822 = scalar_lea.sflag [#allocation11], 1
    %1823 = vsyncpa %s1822, 1
    %1824 = vsyncpa [#allocation14], 1
    %1825 = vsyncpa [#allocation9], 1
    %s1826 = scalar_lea.sflag [#allocation9], 1
    %1827 = vsyncpa %s1826, 1
    %1828 = vsyncpa [#allocation17], 1
    %s1829 = scalar_lea.sflag [#allocation17], 1
    %1830 = vsyncpa %s1829, 1

</llo_original>
